<compile_context>
chip_gen: v7x
topology: tpu7x:2x2x1
jax: 0.10.0
libtpu: 0.0.40
codegen_flags: <defaults>
</compile_context>

<pallas_src>
import math
import functools

import jax
import jax.numpy as jnp
from jax import lax
from jax.experimental import pallas as pl
from jax.experimental.pallas import tpu as pltpu


# ---------------------------------------------------------------------------
# Generation-aware VMEM budget + tiling helpers
# ---------------------------------------------------------------------------

def _vmem_limit_bytes():
    """~3/4 of physical VMEM, capped: v5e/v6e (128 MiB) get ~96 MiB for big
    tiles, v7x (64 MiB physical) gets ~48 MiB."""
    try:
        cap = int(pltpu.get_tpu_info().vmem_capacity_bytes)
    except Exception:  # query unavailable (interpret mode / older runtime)
        cap = 64 * 1024 * 1024
    return int(min(cap * 3 // 4, 96 * 1024 * 1024))


_VMEM_LIMIT = _vmem_limit_bytes()
# Weights up to this size are kept fully resident in VMEM by dense kernels
# (BERT-base matrices are <= ~4.7 MB in bf16, well under this).
_RESIDENT_W_BYTES = min(_VMEM_LIMIT // 4, 24 * 1024 * 1024)


def _pick_tile(dim, target, align):
    """Largest tile <= target that divides `dim` and is a multiple of `align`;
    falls back to the full dim (a block equal to the array dim is always legal)."""
    if dim <= target:
        return dim
    t = (target // align) * align
    while t >= align:
        if dim % t == 0:
            return t
        t -= align
    return dim


def _heads_per_group(nh, dh):
    """Heads per attention group: smallest divisor of nh whose lane width
    (hpg*dh) is a 128 multiple; otherwise all heads in one group (full-H block)."""
    if dh % 128 == 0:
        return 1
    for hpg in range(1, nh):
        if nh % hpg == 0 and (hpg * dh) % 128 == 0:
            return hpg
    return nh


def _qkv_group_perm(H, nh, dh, hpg):
    """Column permutation taking a standard fused [Q | K | V] (head-major)
    weight layout to the per-head-group [Q_g | K_g | V_g] layout consumed by
    the attention kernel (apply offline to real checkpoints as well)."""
    gw = hpg * dh
    cols = []
    for g in range(nh // hpg):
        for which in range(3):          # Q, K, V slabs of this head group
            base = which * H + g * gw
            cols.extend(range(base, base + gw))
    return jnp.asarray(cols, dtype=jnp.int32)


# ---------------------------------------------------------------------------
# Dense: out = act(x @ w + b)
#   - resident-weight path (M-only grid, no K loop) for BERT-sized weights
#   - (M, N, K)-tiled fallback with f32 accumulator otherwise
# ---------------------------------------------------------------------------

def _dense_resident_kernel(x_ref, w_ref, b_ref, o_ref, *, act):
    y = jnp.dot(x_ref[...], w_ref[...], preferred_element_type=jnp.float32)
    y = y + b_ref[...].astype(jnp.float32)
    if act == "gelu":  # exact (erf-based) GELU as in HF BERT; f32 epilogue
        y = 0.5 * y * (1.0 + lax.erf(y * (1.0 / math.sqrt(2.0))))
    o_ref[...] = y.astype(o_ref.dtype)


def _dense_tiled_kernel(x_ref, w_ref, b_ref, o_ref, acc_ref, *, act):
    k = pl.program_id(2)

    @pl.when(k == 0)
    def _():
        acc_ref[...] = jnp.zeros_like(acc_ref)

    acc_ref[...] += jnp.dot(x_ref[...], w_ref[...],
                            preferred_element_type=jnp.float32)

    @pl.when(k == pl.num_programs(2) - 1)
    def _():
        y = acc_ref[...] + b_ref[...].astype(jnp.float32)
        if act == "gelu":
            y = 0.5 * y * (1.0 + lax.erf(y * (1.0 / math.sqrt(2.0))))
        o_ref[...] = y.astype(o_ref.dtype)


def dense(x, w, b, act=None, *, tm=512, tn=256, tk=512, out_dtype=None):
    M, K = x.shape
    Kw, N = w.shape
    assert K == Kw
    out_dtype = out_dtype or x.dtype
    tm = _pick_tile(M, tm, 16)          # 16: bf16 sublane packing
    w_bytes = K * N * w.dtype.itemsize

    if w_bytes <= _RESIDENT_W_BYTES:
        # Weight resident in VMEM (constant block index -> fetched once);
        # only M is tiled, so each operand streams from HBM exactly once.
        return pl.pallas_call(
            functools.partial(_dense_resident_kernel, act=act),
            out_shape=jax.ShapeDtypeStruct((M, N), out_dtype),
            grid=(M // tm,),
            in_specs=[
                pl.BlockSpec((tm, K), lambda i: (i, 0)),
                pl.BlockSpec((K, N), lambda i: (0, 0)),
                pl.BlockSpec((1, N), lambda i: (0, 0)),
            ],
            out_specs=pl.BlockSpec((tm, N), lambda i: (i, 0)),
            compiler_params=pltpu.CompilerParams(
                dimension_semantics=("parallel",),
                vmem_limit_bytes=_VMEM_LIMIT),
        )(x, w, b.reshape(1, N))

    # Fallback for weights too large to keep resident.
    tn = _pick_tile(N, tn, 256 if N % 256 == 0 else 128)
    tk = _pick_tile(K, tk, 256 if K % 256 == 0 else 128)
    grid = (M // tm, N // tn, K // tk)
    return pl.pallas_call(
        functools.partial(_dense_tiled_kernel, act=act),
        out_shape=jax.ShapeDtypeStruct((M, N), out_dtype),
        grid=grid,
        in_specs=[
            pl.BlockSpec((tm, tk), lambda i, j, k: (i, k)),
            pl.BlockSpec((tk, tn), lambda i, j, k: (k, j)),
            pl.BlockSpec((1, tn), lambda i, j, k: (0, j)),
        ],
        out_specs=pl.BlockSpec((tm, tn), lambda i, j, k: (i, j)),
        scratch_shapes=[pltpu.VMEM((tm, tn), jnp.float32)],
        compiler_params=pltpu.CompilerParams(
            dimension_semantics=("parallel", "parallel", "arbitrary"),
            vmem_limit_bytes=_VMEM_LIMIT),
    )(x, w, b.reshape(1, N))


# ---------------------------------------------------------------------------
# Dense + residual add + LayerNorm fused epilogue
#   out = LayerNorm((x @ w + b) + residual)        (N kept whole for the LN)
# ---------------------------------------------------------------------------

def _dense_res_ln_resident_kernel(x_ref, w_ref, b_ref, res_ref, g_ref, be_ref,
                                  o_ref, *, eps):
    y = jnp.dot(x_ref[...], w_ref[...], preferred_element_type=jnp.float32)
    y = y + b_ref[...].astype(jnp.float32) + res_ref[...].astype(jnp.float32)
    mu = jnp.mean(y, axis=-1, keepdims=True)
    var = jnp.mean((y - mu) ** 2, axis=-1, keepdims=True)
    yn = (y - mu) * lax.rsqrt(var + eps)
    o_ref[...] = (yn * g_ref[...].astype(jnp.float32)
                  + be_ref[...].astype(jnp.float32)).astype(o_ref.dtype)


def _dense_res_ln_tiled_kernel(x_ref, w_ref, b_ref, res_ref, g_ref, be_ref,
                               o_ref, acc_ref, *, eps):
    k = pl.program_id(1)

    @pl.when(k == 0)
    def _():
        acc_ref[...] = jnp.zeros_like(acc_ref)

    acc_ref[...] += jnp.dot(x_ref[...], w_ref[...],
                            preferred_element_type=jnp.float32)

    @pl.when(k == pl.num_programs(1) - 1)
    def _():
        y = (acc_ref[...] + b_ref[...].astype(jnp.float32)
             + res_ref[...].astype(jnp.float32))
        mu = jnp.mean(y, axis=-1, keepdims=True)
        var = jnp.mean((y - mu) ** 2, axis=-1, keepdims=True)
        yn = (y - mu) * lax.rsqrt(var + eps)
        o_ref[...] = (yn * g_ref[...].astype(jnp.float32)
                      + be_ref[...].astype(jnp.float32)).astype(o_ref.dtype)


def dense_res_ln(x, w, b, residual, gamma, beta, *, eps=1e-12,
                 tm=512, tk=512, out_dtype=None):
    M, K = x.shape
    Kw, N = w.shape
    assert K == Kw and residual.shape == (M, N)
    out_dtype = out_dtype or residual.dtype
    tm = _pick_tile(M, tm, 16)
    w_bytes = K * N * w.dtype.itemsize

    if w_bytes <= _RESIDENT_W_BYTES:
        return pl.pallas_call(
            functools.partial(_dense_res_ln_resident_kernel, eps=eps),
            out_shape=jax.ShapeDtypeStruct((M, N), out_dtype),
            grid=(M // tm,),
            in_specs=[
                pl.BlockSpec((tm, K), lambda i: (i, 0)),
                pl.BlockSpec((K, N), lambda i: (0, 0)),
                pl.BlockSpec((1, N), lambda i: (0, 0)),
                pl.BlockSpec((tm, N), lambda i: (i, 0)),
                pl.BlockSpec((1, N), lambda i: (0, 0)),
                pl.BlockSpec((1, N), lambda i: (0, 0)),
            ],
            out_specs=pl.BlockSpec((tm, N), lambda i: (i, 0)),
            compiler_params=pltpu.CompilerParams(
                dimension_semantics=("parallel",),
                vmem_limit_bytes=_VMEM_LIMIT),
        )(x, w, b.reshape(1, N), residual, gamma.reshape(1, N), beta.reshape(1, N))

    tk = _pick_tile(K, tk, 256 if K % 256 == 0 else 128)
    grid = (M // tm, K // tk)
    return pl.pallas_call(
        functools.partial(_dense_res_ln_tiled_kernel, eps=eps),
        out_shape=jax.ShapeDtypeStruct((M, N), out_dtype),
        grid=grid,
        in_specs=[
            pl.BlockSpec((tm, tk), lambda i, k: (i, k)),
            pl.BlockSpec((tk, N), lambda i, k: (k, 0)),
            pl.BlockSpec((1, N), lambda i, k: (0, 0)),
            pl.BlockSpec((tm, N), lambda i, k: (i, 0)),
            pl.BlockSpec((1, N), lambda i, k: (0, 0)),
            pl.BlockSpec((1, N), lambda i, k: (0, 0)),
        ],
        out_specs=pl.BlockSpec((tm, N), lambda i, k: (i, 0)),
        scratch_shapes=[pltpu.VMEM((tm, N), jnp.float32)],
        compiler_params=pltpu.CompilerParams(
            dimension_semantics=("parallel", "arbitrary"),
            vmem_limit_bytes=_VMEM_LIMIT),
    )(x, w, b.reshape(1, N), residual, gamma.reshape(1, N), beta.reshape(1, N))


# ---------------------------------------------------------------------------
# Embedding sum (word + position + type) fused with LayerNorm
# ---------------------------------------------------------------------------

def _emb_ln_kernel(tok_ref, pos_ref, typ_ref, g_ref, b_ref, o_ref, *, eps):
    x = (tok_ref[0].astype(jnp.float32) + pos_ref[...].astype(jnp.float32)
         + typ_ref[...].astype(jnp.float32))
    mu = jnp.mean(x, axis=-1, keepdims=True)
    var = jnp.mean((x - mu) ** 2, axis=-1, keepdims=True)
    y = (x - mu) * lax.rsqrt(var + eps)
    o_ref[0] = (y * g_ref[...].astype(jnp.float32)
                + b_ref[...].astype(jnp.float32)).astype(o_ref.dtype)


def embed_layernorm(tok, pos, typ, gamma, beta, *, eps=1e-12, ts=512,
                    out_dtype=jnp.bfloat16):
    B, S, H = tok.shape
    ts = _pick_tile(S, ts, 8)
    return pl.pallas_call(
        functools.partial(_emb_ln_kernel, eps=eps),
        out_shape=jax.ShapeDtypeStruct((B, S, H), out_dtype),
        grid=(B, S // ts),
        in_specs=[
            pl.BlockSpec((1, ts, H), lambda b, s: (b, s, 0)),
            pl.BlockSpec((ts, H), lambda b, s: (s, 0)),
            pl.BlockSpec((1, H), lambda b, s: (0, 0)),
            pl.BlockSpec((1, H), lambda b, s: (0, 0)),
            pl.BlockSpec((1, H), lambda b, s: (0, 0)),
        ],
        out_specs=pl.BlockSpec((1, ts, H), lambda b, s: (b, s, 0)),
        compiler_params=pltpu.CompilerParams(
            dimension_semantics=("parallel", "parallel"),
            vmem_limit_bytes=_VMEM_LIMIT),
    )(tok, pos, typ.reshape(1, H), gamma.reshape(1, H), beta.reshape(1, H))


# ---------------------------------------------------------------------------
# Multi-head self-attention, one (batch, head-group) per grid step.
# QKV columns are laid out per head group: [Q_g | K_g | V_g] (offline perm).
# ---------------------------------------------------------------------------

def _attention_kernel(qkv_ref, bias_ref, o_ref, *, hpg, dh):
    gw = hpg * dh
    qkv = qkv_ref[0]                                    # (S, 3*gw) bf16, lane-dense group slab
    bias = bias_ref[0].astype(jnp.float32)              # (1, S) additive key-padding bias
    scale = jnp.float32(1.0 / math.sqrt(dh))
    # Static unrolled loop over heads in this group; each head's context is
    # stored straight into the output slab (no list + concat copy).
    # TODO(synk): flash-style online softmax with a KV-tile grid axis for long
    # sequences (S >= 512) to bound the (S,S) VMEM footprint.
    for h in range(hpg):
        q = qkv[:, h * dh:(h + 1) * dh]                         # (S, dh)
        k = qkv[:, gw + h * dh:gw + (h + 1) * dh]               # (S, dh)
        v = qkv[:, 2 * gw + h * dh:2 * gw + (h + 1) * dh]       # (S, dh)
        # contract last dims of q and k directly -> no XLU transpose of K
        s = lax.dot_general(q, k, (((1,), (1,)), ((), ())),
                            preferred_element_type=jnp.float32)
        s = s * scale + bias                                    # broadcast over query rows
        s = s - jnp.max(s, axis=-1, keepdims=True)
        p = jnp.exp(s)
        denom = jnp.sum(p, axis=-1, keepdims=True)
        ctx = jnp.dot(p.astype(v.dtype), v, preferred_element_type=jnp.float32)
        # normalize AFTER the PV matmul: (S, dh) multiplies instead of (S, S)
        ctx = ctx * pl.reciprocal(denom, approx=True)
        o_ref[0, :, h * dh:(h + 1) * dh] = ctx.astype(o_ref.dtype)


def attention(qkv, mask_bias, *, nh, dh, hpg):
    """qkv: (B, S, 3H) fused projections in per-group column layout;
    mask_bias: (B, 1, S) additive key-padding bias."""
    B, S, threeH = qkv.shape
    H = nh * dh
    assert threeH == 3 * H and nh % hpg == 0
    ng = nh // hpg
    gw = hpg * dh
    return pl.pallas_call(
        functools.partial(_attention_kernel, hpg=hpg, dh=dh),
        out_shape=jax.ShapeDtypeStruct((B, S, H), qkv.dtype),
        grid=(B, ng),
        in_specs=[
            pl.BlockSpec((1, S, 3 * gw), lambda b, g: (b, 0, g)),
            pl.BlockSpec((1, 1, S), lambda b, g: (b, 0, 0)),
        ],
        out_specs=pl.BlockSpec((1, S, gw), lambda b, g: (b, 0, g)),
        compiler_params=pltpu.CompilerParams(
            dimension_semantics=("parallel", "parallel"),
            vmem_limit_bytes=_VMEM_LIMIT),
    )(qkv, mask_bias)


# ---------------------------------------------------------------------------
# Pooler(tanh) + dropout(eval: identity) + classifier, fused
# ---------------------------------------------------------------------------

def _head_kernel(x_ref, pw_ref, pb_ref, cw_ref, cb_ref, o_ref):
    x = x_ref[...]                                      # (B, H) bf16
    pooled = jnp.tanh(
        jnp.dot(x, pw_ref[...], preferred_element_type=jnp.float32)
        + pb_ref[...].astype(jnp.float32))
    # TODO(synk): training-mode dropout (Bernoulli masking) not implemented;
    # eval-mode dropout is the identity.
    logits = (jnp.dot(pooled, cw_ref[...].astype(jnp.float32),
                      preferred_element_type=jnp.float32)
              + cb_ref[...].astype(jnp.float32))        # pooled kept f32 -> exact logits
    o_ref[...] = logits


def pooler_classifier_head(cls_tokens, pool_w, pool_b, cls_w, cls_b):
    B, H = cls_tokens.shape
    C = cls_w.shape[1]
    return pl.pallas_call(
        _head_kernel,
        out_shape=jax.ShapeDtypeStruct((B, C), jnp.float32),
        grid=(1,),
        in_specs=[
            pl.BlockSpec((B, H), lambda i: (0, 0)),
            pl.BlockSpec((H, H), lambda i: (0, 0)),
            pl.BlockSpec((1, H), lambda i: (0, 0)),
            pl.BlockSpec((H, C), lambda i: (0, 0)),
            pl.BlockSpec((1, C), lambda i: (0, 0)),
        ],
        out_specs=pl.BlockSpec((B, C), lambda i: (0, 0)),
        compiler_params=pltpu.CompilerParams(vmem_limit_bytes=_VMEM_LIMIT),
    )(cls_tokens, pool_w, pool_b.reshape(1, H), cls_w, cls_b.reshape(1, C))


# ---------------------------------------------------------------------------
# Synthetic BERT config + deterministic parameter init
# (real indolem/indobert checkpoint not loadable here; weights bf16 for MXU)
# ---------------------------------------------------------------------------

CFG = dict(
    vocab_size=100,
    hidden=32,
    num_heads=2,
    num_layers=2,
    intermediate=64,
    max_pos=32,
    type_vocab=2,
    num_classes=2,
)


def init_params(key, cfg):
    H, I = cfg["hidden"], cfg["intermediate"]
    nh = cfg["num_heads"]
    dh = H // nh
    hpg = _heads_per_group(nh, dh)
    perm = _qkv_group_perm(H, nh, dh, hpg)

    def nrm(k, shape, scale=0.02, dtype=jnp.bfloat16):
        return (scale * jax.random.normal(k, shape)).astype(dtype)

    keys = iter(jax.random.split(key, 64))
    p = {
        "word_emb": nrm(next(keys), (cfg["vocab_size"], H), dtype=jnp.float32),
        "pos_emb": nrm(next(keys), (cfg["max_pos"], H), dtype=jnp.float32),
        "type_emb": nrm(next(keys), (cfg["type_vocab"], H), dtype=jnp.float32),
        "emb_ln_g": jnp.ones((H,), jnp.float32),
        "emb_ln_b": jnp.zeros((H,), jnp.float32),
        "layers": [],
        "pool_w": nrm(next(keys), (H, H)),
        "pool_b": jnp.zeros((H,), jnp.float32),
        "cls_w": nrm(next(keys), (H, cfg["num_classes"])),
        "cls_b": jnp.zeros((cfg["num_classes"],), jnp.float32),
    }
    for _ in range(cfg["num_layers"]):
        # standard fused [Q | K | V] layout, then offline column permutation
        # into the per-head-group layout consumed by the attention kernel.
        qkv_w_std = nrm(next(keys), (H, 3 * H))
        qkv_b_std = jnp.zeros((3 * H,), jnp.float32)
        lp = {
            "qkv_w": qkv_w_std[:, perm],
            "qkv_b": qkv_b_std[perm],
            "o_w": nrm(next(keys), (H, H)), "o_b": jnp.zeros((H,), jnp.float32),
            "ln1_g": jnp.ones((H,), jnp.float32), "ln1_b": jnp.zeros((H,), jnp.float32),
            "fi_w": nrm(next(keys), (H, I)), "fi_b": jnp.zeros((I,), jnp.float32),
            "fo_w": nrm(next(keys), (I, H)), "fo_b": jnp.zeros((H,), jnp.float32),
            "ln2_g": jnp.ones((H,), jnp.float32), "ln2_b": jnp.zeros((H,), jnp.float32),
        }
        p["layers"].append(lp)
    return p


# ---------------------------------------------------------------------------
# Forward pass (gathers/reshapes are glue; hot-path math in Pallas kernels)
# ---------------------------------------------------------------------------

def indobert_classifier_forward(params, input_ids, attention_mask, cfg):
    B, S = input_ids.shape
    H = cfg["hidden"]
    nh = cfg["num_heads"]
    dh = H // nh
    hpg = _heads_per_group(nh, dh)

    # --- embeddings: token gather in JAX (no clean Pallas gather);
    #     word+pos+type sum is fused into the LayerNorm kernel ---
    # TODO(synk): token_type_ids hard-coded to 0, matching this classifier's use.
    tok = jnp.take(params["word_emb"], input_ids, axis=0)           # (B, S, H) f32
    h = embed_layernorm(tok, params["pos_emb"][:S], params["type_emb"][0],
                        params["emb_ln_g"], params["emb_ln_b"],
                        out_dtype=jnp.bfloat16)                     # (B, S, H) bf16
    h = h.reshape(B * S, H)

    # additive key-padding bias, broadcast over query rows inside the kernel
    # (padded QUERY rows are not masked — fine for CLS-based classification)
    mask_bias = ((1.0 - attention_mask.astype(jnp.float32))
                 * jnp.float32(-1e9)).reshape(B, 1, S)

    # --- transformer layers ---
    for lp in params["layers"]:
        qkv = dense(h, lp["qkv_w"], lp["qkv_b"])                    # (B*S, 3H) bf16
        ctx = attention(qkv.reshape(B, S, 3 * H), mask_bias, nh=nh, dh=dh, hpg=hpg)
        ctx = ctx.reshape(B * S, H)
        # attention output projection + residual + LayerNorm, fused
        h = dense_res_ln(ctx, lp["o_w"], lp["o_b"], h, lp["ln1_g"], lp["ln1_b"])
        inter = dense(h, lp["fi_w"], lp["fi_b"], act="gelu")        # (B*S, I) bf16
        # FFN output projection + residual + LayerNorm, fused
        h = dense_res_ln(inter, lp["fo_w"], lp["fo_b"], h, lp["ln2_g"], lp["ln2_b"])

    # --- pooler tanh + dropout (eval identity) + classifier, one kernel ---
    cls_tokens = h.reshape(B, S, H)[:, 0, :]                        # (B, H)
    logits = pooler_classifier_head(cls_tokens, params["pool_w"], params["pool_b"],
                                    params["cls_w"], params["cls_b"])
    return logits


# ---------------------------------------------------------------------------
# Main
# ---------------------------------------------------------------------------

if __name__ == "__main__":
    key = jax.random.PRNGKey(0)
    pkey, ikey = jax.random.split(key)

    params = init_params(pkey, CFG)

    batch, seq = 2, 8
    input_ids = jax.random.randint(ikey, (batch, seq), 0, CFG["vocab_size"], dtype=jnp.int32)
    attention_mask = jnp.ones((batch, seq), dtype=jnp.int32)
    attention_mask = attention_mask.at[1, 6:].set(0)   # pad out the tail of example 1

    fwd = jax.jit(lambda ids, m: indobert_classifier_forward(params, ids, m, CFG))
    logits = fwd(input_ids, attention_mask)
    jax.block_until_ready(logits)

    assert logits.shape == (batch, CFG["num_classes"])
    assert bool(jnp.all(jnp.isfinite(logits)))
    print("KERNEL_OK")
</pallas_src>

<mosaic_0001>
module attributes {stable_mosaic.version = 11 : i64} {
  func.func @_dense_resident_kernel(%arg0: i32, %arg1: memref<16x32xbf16, #tpu.memory_space<vmem>>, %arg2: memref<32x96xbf16, #tpu.memory_space<vmem>>, %arg3: memref<1x96xf32, #tpu.memory_space<vmem>>, %arg4: memref<16x96xbf16, #tpu.memory_space<vmem>>) attributes {dimension_semantics = [#tpu.dimension_semantics<parallel>], iteration_bounds = array<i64: 1>, scalar_prefetch = 0 : i64, scratch_operands = 0 : i64, tpu.core_type = #tpu.core_type<tc>, window_params = [{transform_indices = @transform_0, window_bounds = array<i64: 16, 32>}, {pipeline_mode = #tpu.pipeline_mode<synchronous>, transform_indices = @transform_1, window_bounds = array<i64: 32, 96>}, {pipeline_mode = #tpu.pipeline_mode<synchronous>, transform_indices = @transform_2, window_bounds = array<i64: 1, 96>}, {transform_indices = @transform_3, window_bounds = array<i64: 16, 96>}]} {
    %c0 = arith.constant 0 : index
    %c0_0 = arith.constant 0 : index
    %0 = vector.load %arg1[%c0, %c0_0] : memref<16x32xbf16, #tpu.memory_space<vmem>>, vector<16x32xbf16>
    %c0_1 = arith.constant 0 : index
    %c0_2 = arith.constant 0 : index
    %1 = vector.load %arg2[%c0_1, %c0_2] : memref<32x96xbf16, #tpu.memory_space<vmem>>, vector<32x96xbf16>
    %cst = arith.constant dense<0.000000e+00> : vector<16x96xf32>
    %2 = tpu.matmul %0, %1, %cst {dimension_numbers = #tpu.dot_dimension_numbers<[1], [0], [0], [1], [0, 0, 1, 1], [], []>} : vector<16x32xbf16>, vector<32x96xbf16>, vector<16x96xf32> -> vector<16x96xf32>
    %c0_3 = arith.constant 0 : index
    %c0_4 = arith.constant 0 : index
    %3 = vector.load %arg3[%c0_3, %c0_4] : memref<1x96xf32, #tpu.memory_space<vmem>>, vector<1x96xf32>
    %4 = vector.broadcast %3 : vector<1x96xf32> to vector<16x96xf32>
    %5 = arith.addf %2, %4 : vector<16x96xf32>
    %6 = arith.truncf %5 : vector<16x96xf32> to vector<16x96xbf16>
    %c0_5 = arith.constant 0 : index
    %c0_6 = arith.constant 0 : index
    %7 = vector.load %arg4[%c0_5, %c0_6] : memref<16x96xbf16, #tpu.memory_space<vmem>>, vector<16x96xbf16>
    tpu.vector_store %arg4[%c0_5, %c0_6], %6 {strides = array<i32>} : memref<16x96xbf16, #tpu.memory_space<vmem>>, vector<16x96xbf16>,
    return
  }
  func.func @transform_0(%arg0: i32) -> (i32, i32) {
    %c0_i32 = arith.constant 0 : i32
    %c0_i32_0 = arith.constant 0 : i32
    return %arg0, %c0_i32 : i32, i32
  }
  func.func @transform_1(%arg0: i32) -> (i32, i32) {
    %c0_i32 = arith.constant 0 : i32
    %c0_i32_0 = arith.constant 0 : i32
    %c0_i32_1 = arith.constant 0 : i32
    return %c0_i32, %c0_i32_0 : i32, i32
  }
  func.func @transform_2(%arg0: i32) -> (i32, i32) {
    %c0_i32 = arith.constant 0 : i32
    %c0_i32_0 = arith.constant 0 : i32
    %c0_i32_1 = arith.constant 0 : i32
    return %c0_i32, %c0_i32_0 : i32, i32
  }
  func.func @transform_3(%arg0: i32) -> (i32, i32) {
    %c0_i32 = arith.constant 0 : i32
    %c0_i32_0 = arith.constant 0 : i32
    return %arg0, %c0_i32 : i32, i32
  }
}

module attributes {stable_mosaic.version = 11 : i64} {
  func.func @_dense_res_ln_resident_kernel(%arg0: i32, %arg1: memref<16x32xbf16, #tpu.memory_space<vmem>>, %arg2: memref<32x32xbf16, #tpu.memory_space<vmem>>, %arg3: memref<1x32xf32, #tpu.memory_space<vmem>>, %arg4: memref<16x32xbf16, #tpu.memory_space<vmem>>, %arg5: memref<1x32xf32, #tpu.memory_space<vmem>>, %arg6: memref<1x32xf32, #tpu.memory_space<vmem>>, %arg7: memref<16x32xbf16, #tpu.memory_space<vmem>>) attributes {dimension_semantics = [#tpu.dimension_semantics<parallel>], iteration_bounds = array<i64: 1>, scalar_prefetch = 0 : i64, scratch_operands = 0 : i64, tpu.core_type = #tpu.core_type<tc>, window_params = [{transform_indices = @transform_0, window_bounds = array<i64: 16, 32>}, {pipeline_mode = #tpu.pipeline_mode<synchronous>, transform_indices = @transform_1, window_bounds = array<i64: 32, 32>}, {pipeline_mode = #tpu.pipeline_mode<synchronous>, transform_indices = @transform_2, window_bounds = array<i64: 1, 32>}, {transform_indices = @transform_3, window_bounds = array<i64: 16, 32>}, {pipeline_mode = #tpu.pipeline_mode<synchronous>, transform_indices = @transform_4, window_bounds = array<i64: 1, 32>}, {pipeline_mode = #tpu.pipeline_mode<synchronous>, transform_indices = @transform_5, window_bounds = array<i64: 1, 32>}, {transform_indices = @transform_6, window_bounds = array<i64: 16, 32>}]} {
    %c0 = arith.constant 0 : index
    %c0_0 = arith.constant 0 : index
    %0 = vector.load %arg1[%c0, %c0_0] : memref<16x32xbf16, #tpu.memory_space<vmem>>, vector<16x32xbf16>
    %c0_1 = arith.constant 0 : index
    %c0_2 = arith.constant 0 : index
    %1 = vector.load %arg2[%c0_1, %c0_2] : memref<32x32xbf16, #tpu.memory_space<vmem>>, vector<32x32xbf16>
    %cst = arith.constant dense<0.000000e+00> : vector<16x32xf32>
    %2 = tpu.matmul %0, %1, %cst {dimension_numbers = #tpu.dot_dimension_numbers<[1], [0], [0], [1], [0, 0, 1, 1], [], []>} : vector<16x32xbf16>, vector<32x32xbf16>, vector<16x32xf32> -> vector<16x32xf32>
    %c0_3 = arith.constant 0 : index
    %c0_4 = arith.constant 0 : index
    %3 = vector.load %arg3[%c0_3, %c0_4] : memref<1x32xf32, #tpu.memory_space<vmem>>, vector<1x32xf32>
    %4 = vector.broadcast %3 : vector<1x32xf32> to vector<16x32xf32>
    %5 = arith.addf %2, %4 : vector<16x32xf32>
    %c0_5 = arith.constant 0 : index
    %c0_6 = arith.constant 0 : index
    %6 = vector.load %arg4[%c0_5, %c0_6] : memref<16x32xbf16, #tpu.memory_space<vmem>>, vector<16x32xbf16>
    %7 = arith.extf %6 : vector<16x32xbf16> to vector<16x32xf32>
    %8 = arith.addf %5, %7 : vector<16x32xf32>
    %cst_7 = arith.constant dense<0.000000e+00> : vector<16xf32>
    %9 = vector.multi_reduction <add>, %8, %cst_7 [1] : vector<16x32xf32> to vector<16xf32>
    %10 = vector.shape_cast %9 : vector<16xf32> to vector<16x1xf32>
    %cst_8 = arith.constant 3.200000e+01 : f32
    %11 = vector.broadcast %cst_8 : f32 to vector<16x1xf32>
    %12 = arith.divf %10, %11 : vector<16x1xf32>
    %13 = vector.broadcast %12 : vector<16x1xf32> to vector<16x32xf32>
    %14 = arith.subf %8, %13 : vector<16x32xf32>
    %15 = arith.mulf %14, %14 : vector<16x32xf32>
    %cst_9 = arith.constant dense<0.000000e+00> : vector<16xf32>
    %16 = vector.multi_reduction <add>, %15, %cst_9 [1] : vector<16x32xf32> to vector<16xf32>
    %17 = vector.shape_cast %16 : vector<16xf32> to vector<16x1xf32>
    %cst_10 = arith.constant 3.200000e+01 : f32
    %18 = vector.broadcast %cst_10 : f32 to vector<16x1xf32>
    %19 = arith.divf %17, %18 : vector<16x1xf32>
    %20 = vector.broadcast %12 : vector<16x1xf32> to vector<16x32xf32>
    %21 = arith.subf %8, %20 : vector<16x32xf32>
    %cst_11 = arith.constant 9.99999996E-13 : f32
    %22 = vector.broadcast %cst_11 : f32 to vector<16x1xf32>
    %23 = arith.addf %19, %22 : vector<16x1xf32>
    %24 = math.rsqrt %23 : vector<16x1xf32>
    %25 = vector.broadcast %24 : vector<16x1xf32> to vector<16x32xf32>
    %26 = arith.mulf %21, %25 : vector<16x32xf32>
    %c0_12 = arith.constant 0 : index
    %c0_13 = arith.constant 0 : index
    %27 = vector.load %arg5[%c0_12, %c0_13] : memref<1x32xf32, #tpu.memory_space<vmem>>, vector<1x32xf32>
    %28 = vector.broadcast %27 : vector<1x32xf32> to vector<16x32xf32>
    %29 = arith.mulf %26, %28 : vector<16x32xf32>
    %c0_14 = arith.constant 0 : index
    %c0_15 = arith.constant 0 : index
    %30 = vector.load %arg6[%c0_14, %c0_15] : memref<1x32xf32, #tpu.memory_space<vmem>>, vector<1x32xf32>
    %31 = vector.broadcast %30 : vector<1x32xf32> to vector<16x32xf32>
    %32 = arith.addf %29, %31 : vector<16x32xf32>
    %33 = arith.truncf %32 : vector<16x32xf32> to vector<16x32xbf16>
    %c0_16 = arith.constant 0 : index
    %c0_17 = arith.constant 0 : index
    %34 = vector.load %arg7[%c0_16, %c0_17] : memref<16x32xbf16, #tpu.memory_space<vmem>>, vector<16x32xbf16>
    tpu.vector_store %arg7[%c0_16, %c0_17], %33 {strides = array<i32>} : memref<16x32xbf16, #tpu.memory_space<vmem>>, vector<16x32xbf16>,
    return
  }
  func.func @transform_0(%arg0: i32) -> (i32, i32) {
    %c0_i32 = arith.constant 0 : i32
    %c0_i32_0 = arith.constant 0 : i32
    return %arg0, %c0_i32 : i32, i32
  }
  func.func @transform_1(%arg0: i32) -> (i32, i32) {
    %c0_i32 = arith.constant 0 : i32
    %c0_i32_0 = arith.constant 0 : i32
    %c0_i32_1 = arith.constant 0 : i32
    return %c0_i32, %c0_i32_0 : i32, i32
  }
  func.func @transform_2(%arg0: i32) -> (i32, i32) {
    %c0_i32 = arith.constant 0 : i32
    %c0_i32_0 = arith.constant 0 : i32
    %c0_i32_1 = arith.constant 0 : i32
    return %c0_i32, %c0_i32_0 : i32, i32
  }
  func.func @transform_3(%arg0: i32) -> (i32, i32) {
    %c0_i32 = arith.constant 0 : i32
    %c0_i32_0 = arith.constant 0 : i32
    return %arg0, %c0_i32 : i32, i32
  }
  func.func @transform_4(%arg0: i32) -> (i32, i32) {
    %c0_i32 = arith.constant 0 : i32
    %c0_i32_0 = arith.constant 0 : i32
    %c0_i32_1 = arith.constant 0 : i32
    return %c0_i32, %c0_i32_0 : i32, i32
  }
  func.func @transform_5(%arg0: i32) -> (i32, i32) {
    %c0_i32 = arith.constant 0 : i32
    %c0_i32_0 = arith.constant 0 : i32
    %c0_i32_1 = arith.constant 0 : i32
    return %c0_i32, %c0_i32_0 : i32, i32
  }
  func.func @transform_6(%arg0: i32) -> (i32, i32) {
    %c0_i32 = arith.constant 0 : i32
    %c0_i32_0 = arith.constant 0 : i32
    return %arg0, %c0_i32 : i32, i32
  }
}

module attributes {stable_mosaic.version = 11 : i64} {
  func.func @_emb_ln_kernel(%arg0: i32, %arg1: i32, %arg2: memref<1x8x32xf32, #tpu.memory_space<vmem>>, %arg3: memref<8x32xf32, #tpu.memory_space<vmem>>, %arg4: memref<1x32xf32, #tpu.memory_space<vmem>>, %arg5: memref<1x32xf32, #tpu.memory_space<vmem>>, %arg6: memref<1x32xf32, #tpu.memory_space<vmem>>, %arg7: memref<1x8x32xbf16, #tpu.memory_space<vmem>>) attributes {dimension_semantics = [#tpu.dimension_semantics<parallel>, #tpu.dimension_semantics<parallel>], iteration_bounds = array<i64: 2, 1>, scalar_prefetch = 0 : i64, scratch_operands = 0 : i64, tpu.core_type = #tpu.core_type<tc>, window_params = [{transform_indices = @transform_0, window_bounds = array<i64: 1, 8, 32>}, {transform_indices = @transform_1, window_bounds = array<i64: 8, 32>}, {pipeline_mode = #tpu.pipeline_mode<synchronous>, transform_indices = @transform_2, window_bounds = array<i64: 1, 32>}, {pipeline_mode = #tpu.pipeline_mode<synchronous>, transform_indices = @transform_3, window_bounds = array<i64: 1, 32>}, {pipeline_mode = #tpu.pipeline_mode<synchronous>, transform_indices = @transform_4, window_bounds = array<i64: 1, 32>}, {transform_indices = @transform_5, window_bounds = array<i64: 1, 8, 32>}]} {
    %c0 = arith.constant 0 : index
    %c0_0 = arith.constant 0 : index
    %c0_1 = arith.constant 0 : index
    %0 = vector.load %arg2[%c0, %c0_0, %c0_1] : memref<1x8x32xf32, #tpu.memory_space<vmem>>, vector<1x8x32xf32>
    %1 = vector.shape_cast %0 : vector<1x8x32xf32> to vector<8x32xf32>
    %c0_2 = arith.constant 0 : index
    %c0_3 = arith.constant 0 : index
    %2 = vector.load %arg3[%c0_2, %c0_3] : memref<8x32xf32, #tpu.memory_space<vmem>>, vector<8x32xf32>
    %3 = arith.addf %1, %2 : vector<8x32xf32>
    %c0_4 = arith.constant 0 : index
    %c0_5 = arith.constant 0 : index
    %4 = vector.load %arg4[%c0_4, %c0_5] : memref<1x32xf32, #tpu.memory_space<vmem>>, vector<1x32xf32>
    %5 = vector.broadcast %4 : vector<1x32xf32> to vector<8x32xf32>
    %6 = arith.addf %3, %5 : vector<8x32xf32>
    %cst = arith.constant dense<0.000000e+00> : vector<8xf32>
    %7 = vector.multi_reduction <add>, %6, %cst [1] : vector<8x32xf32> to vector<8xf32>
    %8 = vector.shape_cast %7 : vector<8xf32> to vector<8x1xf32>
    %cst_6 = arith.constant 3.200000e+01 : f32
    %9 = vector.broadcast %cst_6 : f32 to vector<8x1xf32>
    %10 = arith.divf %8, %9 : vector<8x1xf32>
    %11 = vector.broadcast %10 : vector<8x1xf32> to vector<8x32xf32>
    %12 = arith.subf %6, %11 : vector<8x32xf32>
    %13 = arith.mulf %12, %12 : vector<8x32xf32>
    %cst_7 = arith.constant dense<0.000000e+00> : vector<8xf32>
    %14 = vector.multi_reduction <add>, %13, %cst_7 [1] : vector<8x32xf32> to vector<8xf32>
    %15 = vector.shape_cast %14 : vector<8xf32> to vector<8x1xf32>
    %cst_8 = arith.constant 3.200000e+01 : f32
    %16 = vector.broadcast %cst_8 : f32 to vector<8x1xf32>
    %17 = arith.divf %15, %16 : vector<8x1xf32>
    %18 = vector.broadcast %10 : vector<8x1xf32> to vector<8x32xf32>
    %19 = arith.subf %6, %18 : vector<8x32xf32>
    %cst_9 = arith.constant 9.99999996E-13 : f32
    %20 = vector.broadcast %cst_9 : f32 to vector<8x1xf32>
    %21 = arith.addf %17, %20 : vector<8x1xf32>
    %22 = math.rsqrt %21 : vector<8x1xf32>
    %23 = vector.broadcast %22 : vector<8x1xf32> to vector<8x32xf32>
    %24 = arith.mulf %19, %23 : vector<8x32xf32>
    %c0_10 = arith.constant 0 : index
    %c0_11 = arith.constant 0 : index
    %25 = vector.load %arg5[%c0_10, %c0_11] : memref<1x32xf32, #tpu.memory_space<vmem>>, vector<1x32xf32>
    %26 = vector.broadcast %25 : vector<1x32xf32> to vector<8x32xf32>
    %27 = arith.mulf %24, %26 : vector<8x32xf32>
    %c0_12 = arith.constant 0 : index
    %c0_13 = arith.constant 0 : index
    %28 = vector.load %arg6[%c0_12, %c0_13] : memref<1x32xf32, #tpu.memory_space<vmem>>, vector<1x32xf32>
    %29 = vector.broadcast %28 : vector<1x32xf32> to vector<8x32xf32>
    %30 = arith.addf %27, %29 : vector<8x32xf32>
    %31 = arith.truncf %30 : vector<8x32xf32> to vector<8x32xbf16>
    %c0_14 = arith.constant 0 : index
    %c0_15 = arith.constant 0 : index
    %c0_16 = arith.constant 0 : index
    %32 = vector.load %arg7[%c0_14, %c0_15, %c0_16] : memref<1x8x32xbf16, #tpu.memory_space<vmem>>, vector<1x8x32xbf16>
    %33 = vector.shape_cast %32 : vector<1x8x32xbf16> to vector<8x32xbf16>
    %34 = vector.shape_cast %31 : vector<8x32xbf16> to vector<1x8x32xbf16>
    tpu.vector_store %arg7[%c0_14, %c0_15, %c0_16], %34 {strides = array<i32>} : memref<1x8x32xbf16, #tpu.memory_space<vmem>>, vector<1x8x32xbf16>,
    return
  }
  func.func @transform_0(%arg0: i32, %arg1: i32) -> (i32, i32, i32) {
    %c0_i32 = arith.constant 0 : i32
    %c0_i32_0 = arith.constant 0 : i32
    return %arg0, %arg1, %c0_i32 : i32, i32, i32
  }
  func.func @transform_1(%arg0: i32, %arg1: i32) -> (i32, i32) {
    %c0_i32 = arith.constant 0 : i32
    %c0_i32_0 = arith.constant 0 : i32
    return %arg1, %c0_i32 : i32, i32
  }
  func.func @transform_2(%arg0: i32, %arg1: i32) -> (i32, i32) {
    %c0_i32 = arith.constant 0 : i32
    %c0_i32_0 = arith.constant 0 : i32
    %c0_i32_1 = arith.constant 0 : i32
    return %c0_i32, %c0_i32_0 : i32, i32
  }
  func.func @transform_3(%arg0: i32, %arg1: i32) -> (i32, i32) {
    %c0_i32 = arith.constant 0 : i32
    %c0_i32_0 = arith.constant 0 : i32
    %c0_i32_1 = arith.constant 0 : i32
    return %c0_i32, %c0_i32_0 : i32, i32
  }
  func.func @transform_4(%arg0: i32, %arg1: i32) -> (i32, i32) {
    %c0_i32 = arith.constant 0 : i32
    %c0_i32_0 = arith.constant 0 : i32
    %c0_i32_1 = arith.constant 0 : i32
    return %c0_i32, %c0_i32_0 : i32, i32
  }
  func.func @transform_5(%arg0: i32, %arg1: i32) -> (i32, i32, i32) {
    %c0_i32 = arith.constant 0 : i32
    %c0_i32_0 = arith.constant 0 : i32
    return %arg0, %arg1, %c0_i32 : i32, i32, i32
  }
}

module attributes {stable_mosaic.version = 11 : i64} {
  func.func @_attention_kernel(%arg0: i32, %arg1: i32, %arg2: memref<1x8x96xbf16, #tpu.memory_space<vmem>>, %arg3: memref<1x1x8xf32, #tpu.memory_space<vmem>>, %arg4: memref<1x8x32xbf16, #tpu.memory_space<vmem>>) attributes {dimension_semantics = [#tpu.dimension_semantics<parallel>, #tpu.dimension_semantics<parallel>], iteration_bounds = array<i64: 2, 1>, scalar_prefetch = 0 : i64, scratch_operands = 0 : i64, tpu.core_type = #tpu.core_type<tc>, window_params = [{transform_indices = @transform_0, window_bounds = array<i64: 1, 8, 96>}, {transform_indices = @transform_1, window_bounds = array<i64: 1, 1, 8>}, {transform_indices = @transform_2, window_bounds = array<i64: 1, 8, 32>}]} {
    %c0 = arith.constant 0 : index
    %c0_0 = arith.constant 0 : index
    %c0_1 = arith.constant 0 : index
    %0 = vector.load %arg2[%c0, %c0_0, %c0_1] : memref<1x8x96xbf16, #tpu.memory_space<vmem>>, vector<1x8x96xbf16>
    %1 = vector.shape_cast %0 : vector<1x8x96xbf16> to vector<8x96xbf16>
    %c0_2 = arith.constant 0 : index
    %c0_3 = arith.constant 0 : index
    %c0_4 = arith.constant 0 : index
    %2 = vector.load %arg3[%c0_2, %c0_3, %c0_4] : memref<1x1x8xf32, #tpu.memory_space<vmem>>, vector<1x1x8xf32>
    %3 = vector.shape_cast %2 : vector<1x1x8xf32> to vector<1x8xf32>
    %4 = vector.extract_strided_slice %1 {offsets = [0, 0], sizes = [8, 16], strides = [1, 1]} : vector<8x96xbf16> to vector<8x16xbf16>
    %5 = vector.extract_strided_slice %1 {offsets = [0, 32], sizes = [8, 16], strides = [1, 1]} : vector<8x96xbf16> to vector<8x16xbf16>
    %6 = vector.extract_strided_slice %1 {offsets = [0, 64], sizes = [8, 16], strides = [1, 1]} : vector<8x96xbf16> to vector<8x16xbf16>
    %cst = arith.constant dense<0.000000e+00> : vector<8x8xf32>
    %7 = tpu.matmul %4, %5, %cst {dimension_numbers = #tpu.dot_dimension_numbers<[1], [1], [0], [0], [0, 0, 1, 0], [], []>} : vector<8x16xbf16>, vector<8x16xbf16>, vector<8x8xf32> -> vector<8x8xf32>
    %cst_5 = arith.constant 2.500000e-01 : f32
    %8 = vector.broadcast %cst_5 : f32 to vector<8x8xf32>
    %9 = arith.mulf %7, %8 : vector<8x8xf32>
    %10 = vector.broadcast %3 : vector<1x8xf32> to vector<8x8xf32>
    %11 = arith.addf %9, %10 : vector<8x8xf32>
    %cst_6 = arith.constant dense<0xFF800000> : vector<8xf32>
    %12 = vector.multi_reduction <maximumf>, %11, %cst_6 [1] : vector<8x8xf32> to vector<8xf32>
    %13 = vector.shape_cast %12 : vector<8xf32> to vector<8x1xf32>
    %14 = vector.broadcast %13 : vector<8x1xf32> to vector<8x8xf32>
    %15 = arith.subf %11, %14 : vector<8x8xf32>
    %16 = math.exp %15 : vector<8x8xf32>
    %cst_7 = arith.constant dense<0.000000e+00> : vector<8xf32>
    %17 = vector.multi_reduction <add>, %16, %cst_7 [1] : vector<8x8xf32> to vector<8xf32>
    %18 = vector.shape_cast %17 : vector<8xf32> to vector<8x1xf32>
    %19 = arith.truncf %16 : vector<8x8xf32> to vector<8x8xbf16>
    %cst_8 = arith.constant dense<0.000000e+00> : vector<8x16xf32>
    %20 = tpu.matmul %19, %6, %cst_8 {dimension_numbers = #tpu.dot_dimension_numbers<[1], [0], [0], [1], [0, 0, 1, 1], [], []>} : vector<8x8xbf16>, vector<8x16xbf16>, vector<8x16xf32> -> vector<8x16xf32>
    %21 = tpu.reciprocal %18 {approx = true} : vector<8x1xf32> -> vector<8x1xf32>
    %22 = vector.broadcast %21 : vector<8x1xf32> to vector<8x16xf32>
    %23 = arith.mulf %20, %22 : vector<8x16xf32>
    %24 = arith.truncf %23 : vector<8x16xf32> to vector<8x16xbf16>
    %c0_9 = arith.constant 0 : index
    %c0_10 = arith.constant 0 : index
    %c0_11 = arith.constant 0 : index
    %25 = vector.load %arg4[%c0_9, %c0_10, %c0_11] : memref<1x8x32xbf16, #tpu.memory_space<vmem>>, vector<1x8x16xbf16>
    %26 = vector.shape_cast %25 : vector<1x8x16xbf16> to vector<8x16xbf16>
    %27 = vector.shape_cast %24 : vector<8x16xbf16> to vector<1x8x16xbf16>
    tpu.vector_store %arg4[%c0_9, %c0_10, %c0_11], %27 {strides = array<i32>} : memref<1x8x32xbf16, #tpu.memory_space<vmem>>, vector<1x8x16xbf16>,
    %28 = vector.extract_strided_slice %1 {offsets = [0, 16], sizes = [8, 16], strides = [1, 1]} : vector<8x96xbf16> to vector<8x16xbf16>
    %29 = vector.extract_strided_slice %1 {offsets = [0, 48], sizes = [8, 16], strides = [1, 1]} : vector<8x96xbf16> to vector<8x16xbf16>
    %30 = vector.extract_strided_slice %1 {offsets = [0, 80], sizes = [8, 16], strides = [1, 1]} : vector<8x96xbf16> to vector<8x16xbf16>
    %cst_12 = arith.constant dense<0.000000e+00> : vector<8x8xf32>
    %31 = tpu.matmul %28, %29, %cst_12 {dimension_numbers = #tpu.dot_dimension_numbers<[1], [1], [0], [0], [0, 0, 1, 0], [], []>} : vector<8x16xbf16>, vector<8x16xbf16>, vector<8x8xf32> -> vector<8x8xf32>
    %cst_13 = arith.constant 2.500000e-01 : f32
    %32 = vector.broadcast %cst_13 : f32 to vector<8x8xf32>
    %33 = arith.mulf %31, %32 : vector<8x8xf32>
    %34 = vector.broadcast %3 : vector<1x8xf32> to vector<8x8xf32>
    %35 = arith.addf %33, %34 : vector<8x8xf32>
    %cst_14 = arith.constant dense<0xFF800000> : vector<8xf32>
    %36 = vector.multi_reduction <maximumf>, %35, %cst_14 [1] : vector<8x8xf32> to vector<8xf32>
    %37 = vector.shape_cast %36 : vector<8xf32> to vector<8x1xf32>
    %38 = vector.broadcast %37 : vector<8x1xf32> to vector<8x8xf32>
    %39 = arith.subf %35, %38 : vector<8x8xf32>
    %40 = math.exp %39 : vector<8x8xf32>
    %cst_15 = arith.constant dense<0.000000e+00> : vector<8xf32>
    %41 = vector.multi_reduction <add>, %40, %cst_15 [1] : vector<8x8xf32> to vector<8xf32>
    %42 = vector.shape_cast %41 : vector<8xf32> to vector<8x1xf32>
    %43 = arith.truncf %40 : vector<8x8xf32> to vector<8x8xbf16>
    %cst_16 = arith.constant dense<0.000000e+00> : vector<8x16xf32>
    %44 = tpu.matmul %43, %30, %cst_16 {dimension_numbers = #tpu.dot_dimension_numbers<[1], [0], [0], [1], [0, 0, 1, 1], [], []>} : vector<8x8xbf16>, vector<8x16xbf16>, vector<8x16xf32> -> vector<8x16xf32>
    %45 = tpu.reciprocal %42 {approx = true} : vector<8x1xf32> -> vector<8x1xf32>
    %46 = vector.broadcast %45 : vector<8x1xf32> to vector<8x16xf32>
    %47 = arith.mulf %44, %46 : vector<8x16xf32>
    %48 = arith.truncf %47 : vector<8x16xf32> to vector<8x16xbf16>
    %c0_17 = arith.constant 0 : index
    %c0_18 = arith.constant 0 : index
    %c16 = arith.constant 16 : index
    %49 = vector.load %arg4[%c0_17, %c0_18, %c16] : memref<1x8x32xbf16, #tpu.memory_space<vmem>>, vector<1x8x16xbf16>
    %50 = vector.shape_cast %49 : vector<1x8x16xbf16> to vector<8x16xbf16>
    %51 = vector.shape_cast %48 : vector<8x16xbf16> to vector<1x8x16xbf16>
    tpu.vector_store %arg4[%c0_17, %c0_18, %c16], %51 {strides = array<i32>} : memref<1x8x32xbf16, #tpu.memory_space<vmem>>, vector<1x8x16xbf16>,
    return
  }
  func.func @transform_0(%arg0: i32, %arg1: i32) -> (i32, i32, i32) {
    %c0_i32 = arith.constant 0 : i32
    %c0_i32_0 = arith.constant 0 : i32
    return %arg0, %c0_i32, %arg1 : i32, i32, i32
  }
  func.func @transform_1(%arg0: i32, %arg1: i32) -> (i32, i32, i32) {
    %c0_i32 = arith.constant 0 : i32
    %c0_i32_0 = arith.constant 0 : i32
    %c0_i32_1 = arith.constant 0 : i32
    return %arg0, %c0_i32, %c0_i32_0 : i32, i32, i32
  }
  func.func @transform_2(%arg0: i32, %arg1: i32) -> (i32, i32, i32) {
    %c0_i32 = arith.constant 0 : i32
    %c0_i32_0 = arith.constant 0 : i32
    return %arg0, %c0_i32, %arg1 : i32, i32, i32
  }
}

module attributes {stable_mosaic.version = 11 : i64} {
  func.func @_dense_res_ln_resident_kernel(%arg0: i32, %arg1: memref<16x64xbf16, #tpu.memory_space<vmem>>, %arg2: memref<64x32xbf16, #tpu.memory_space<vmem>>, %arg3: memref<1x32xf32, #tpu.memory_space<vmem>>, %arg4: memref<16x32xbf16, #tpu.memory_space<vmem>>, %arg5: memref<1x32xf32, #tpu.memory_space<vmem>>, %arg6: memref<1x32xf32, #tpu.memory_space<vmem>>, %arg7: memref<16x32xbf16, #tpu.memory_space<vmem>>) attributes {dimension_semantics = [#tpu.dimension_semantics<parallel>], iteration_bounds = array<i64: 1>, scalar_prefetch = 0 : i64, scratch_operands = 0 : i64, tpu.core_type = #tpu.core_type<tc>, window_params = [{transform_indices = @transform_0, window_bounds = array<i64: 16, 64>}, {pipeline_mode = #tpu.pipeline_mode<synchronous>, transform_indices = @transform_1, window_bounds = array<i64: 64, 32>}, {pipeline_mode = #tpu.pipeline_mode<synchronous>, transform_indices = @transform_2, window_bounds = array<i64: 1, 32>}, {transform_indices = @transform_3, window_bounds = array<i64: 16, 32>}, {pipeline_mode = #tpu.pipeline_mode<synchronous>, transform_indices = @transform_4, window_bounds = array<i64: 1, 32>}, {pipeline_mode = #tpu.pipeline_mode<synchronous>, transform_indices = @transform_5, window_bounds = array<i64: 1, 32>}, {transform_indices = @transform_6, window_bounds = array<i64: 16, 32>}]} {
    %c0 = arith.constant 0 : index
    %c0_0 = arith.constant 0 : index
    %0 = vector.load %arg1[%c0, %c0_0] : memref<16x64xbf16, #tpu.memory_space<vmem>>, vector<16x64xbf16>
    %c0_1 = arith.constant 0 : index
    %c0_2 = arith.constant 0 : index
    %1 = vector.load %arg2[%c0_1, %c0_2] : memref<64x32xbf16, #tpu.memory_space<vmem>>, vector<64x32xbf16>
    %cst = arith.constant dense<0.000000e+00> : vector<16x32xf32>
    %2 = tpu.matmul %0, %1, %cst {dimension_numbers = #tpu.dot_dimension_numbers<[1], [0], [0], [1], [0, 0, 1, 1], [], []>} : vector<16x64xbf16>, vector<64x32xbf16>, vector<16x32xf32> -> vector<16x32xf32>
    %c0_3 = arith.constant 0 : index
    %c0_4 = arith.constant 0 : index
    %3 = vector.load %arg3[%c0_3, %c0_4] : memref<1x32xf32, #tpu.memory_space<vmem>>, vector<1x32xf32>
    %4 = vector.broadcast %3 : vector<1x32xf32> to vector<16x32xf32>
    %5 = arith.addf %2, %4 : vector<16x32xf32>
    %c0_5 = arith.constant 0 : index
    %c0_6 = arith.constant 0 : index
    %6 = vector.load %arg4[%c0_5, %c0_6] : memref<16x32xbf16, #tpu.memory_space<vmem>>, vector<16x32xbf16>
    %7 = arith.extf %6 : vector<16x32xbf16> to vector<16x32xf32>
    %8 = arith.addf %5, %7 : vector<16x32xf32>
    %cst_7 = arith.constant dense<0.000000e+00> : vector<16xf32>
    %9 = vector.multi_reduction <add>, %8, %cst_7 [1] : vector<16x32xf32> to vector<16xf32>
    %10 = vector.shape_cast %9 : vector<16xf32> to vector<16x1xf32>
    %cst_8 = arith.constant 3.200000e+01 : f32
    %11 = vector.broadcast %cst_8 : f32 to vector<16x1xf32>
    %12 = arith.divf %10, %11 : vector<16x1xf32>
    %13 = vector.broadcast %12 : vector<16x1xf32> to vector<16x32xf32>
    %14 = arith.subf %8, %13 : vector<16x32xf32>
    %15 = arith.mulf %14, %14 : vector<16x32xf32>
    %cst_9 = arith.constant dense<0.000000e+00> : vector<16xf32>
    %16 = vector.multi_reduction <add>, %15, %cst_9 [1] : vector<16x32xf32> to vector<16xf32>
    %17 = vector.shape_cast %16 : vector<16xf32> to vector<16x1xf32>
    %cst_10 = arith.constant 3.200000e+01 : f32
    %18 = vector.broadcast %cst_10 : f32 to vector<16x1xf32>
    %19 = arith.divf %17, %18 : vector<16x1xf32>
    %20 = vector.broadcast %12 : vector<16x1xf32> to vector<16x32xf32>
    %21 = arith.subf %8, %20 : vector<16x32xf32>
    %cst_11 = arith.constant 9.99999996E-13 : f32
    %22 = vector.broadcast %cst_11 : f32 to vector<16x1xf32>
    %23 = arith.addf %19, %22 : vector<16x1xf32>
    %24 = math.rsqrt %23 : vector<16x1xf32>
    %25 = vector.broadcast %24 : vector<16x1xf32> to vector<16x32xf32>
    %26 = arith.mulf %21, %25 : vector<16x32xf32>
    %c0_12 = arith.constant 0 : index
    %c0_13 = arith.constant 0 : index
    %27 = vector.load %arg5[%c0_12, %c0_13] : memref<1x32xf32, #tpu.memory_space<vmem>>, vector<1x32xf32>
    %28 = vector.broadcast %27 : vector<1x32xf32> to vector<16x32xf32>
    %29 = arith.mulf %26, %28 : vector<16x32xf32>
    %c0_14 = arith.constant 0 : index
    %c0_15 = arith.constant 0 : index
    %30 = vector.load %arg6[%c0_14, %c0_15] : memref<1x32xf32, #tpu.memory_space<vmem>>, vector<1x32xf32>
    %31 = vector.broadcast %30 : vector<1x32xf32> to vector<16x32xf32>
    %32 = arith.addf %29, %31 : vector<16x32xf32>
    %33 = arith.truncf %32 : vector<16x32xf32> to vector<16x32xbf16>
    %c0_16 = arith.constant 0 : index
    %c0_17 = arith.constant 0 : index
    %34 = vector.load %arg7[%c0_16, %c0_17] : memref<16x32xbf16, #tpu.memory_space<vmem>>, vector<16x32xbf16>
    tpu.vector_store %arg7[%c0_16, %c0_17], %33 {strides = array<i32>} : memref<16x32xbf16, #tpu.memory_space<vmem>>, vector<16x32xbf16>,
    return
  }
  func.func @transform_0(%arg0: i32) -> (i32, i32) {
    %c0_i32 = arith.constant 0 : i32
    %c0_i32_0 = arith.constant 0 : i32
    return %arg0, %c0_i32 : i32, i32
  }
  func.func @transform_1(%arg0: i32) -> (i32, i32) {
    %c0_i32 = arith.constant 0 : i32
    %c0_i32_0 = arith.constant 0 : i32
    %c0_i32_1 = arith.constant 0 : i32
    return %c0_i32, %c0_i32_0 : i32, i32
  }
  func.func @transform_2(%arg0: i32) -> (i32, i32) {
    %c0_i32 = arith.constant 0 : i32
    %c0_i32_0 = arith.constant 0 : i32
    %c0_i32_1 = arith.constant 0 : i32
    return %c0_i32, %c0_i32_0 : i32, i32
  }
  func.func @transform_3(%arg0: i32) -> (i32, i32) {
    %c0_i32 = arith.constant 0 : i32
    %c0_i32_0 = arith.constant 0 : i32
    return %arg0, %c0_i32 : i32, i32
  }
  func.func @transform_4(%arg0: i32) -> (i32, i32) {
    %c0_i32 = arith.constant 0 : i32
    %c0_i32_0 = arith.constant 0 : i32
    %c0_i32_1 = arith.constant 0 : i32
    return %c0_i32, %c0_i32_0 : i32, i32
  }
  func.func @transform_5(%arg0: i32) -> (i32, i32) {
    %c0_i32 = arith.constant 0 : i32
    %c0_i32_0 = arith.constant 0 : i32
    %c0_i32_1 = arith.constant 0 : i32
    return %c0_i32, %c0_i32_0 : i32, i32
  }
  func.func @transform_6(%arg0: i32) -> (i32, i32) {
    %c0_i32 = arith.constant 0 : i32
    %c0_i32_0 = arith.constant 0 : i32
    return %arg0, %c0_i32 : i32, i32
  }
}

module attributes {stable_mosaic.version = 11 : i64} {
  func.func @_head_kernel(%arg0: i32, %arg1: memref<2x32xbf16, #tpu.memory_space<vmem>>, %arg2: memref<32x32xbf16, #tpu.memory_space<vmem>>, %arg3: memref<1x32xf32, #tpu.memory_space<vmem>>, %arg4: memref<32x2xbf16, #tpu.memory_space<vmem>>, %arg5: memref<1x2xf32, #tpu.memory_space<vmem>>, %arg6: memref<2x2xf32, #tpu.memory_space<vmem>>) attributes {dimension_semantics = [#tpu.dimension_semantics<arbitrary>], iteration_bounds = array<i64: 1>, scalar_prefetch = 0 : i64, scratch_operands = 0 : i64, tpu.core_type = #tpu.core_type<tc>, window_params = [{pipeline_mode = #tpu.pipeline_mode<synchronous>, transform_indices = @transform_0, window_bounds = array<i64: 2, 32>}, {pipeline_mode = #tpu.pipeline_mode<synchronous>, transform_indices = @transform_1, window_bounds = array<i64: 32, 32>}, {pipeline_mode = #tpu.pipeline_mode<synchronous>, transform_indices = @transform_2, window_bounds = array<i64: 1, 32>}, {pipeline_mode = #tpu.pipeline_mode<synchronous>, transform_indices = @transform_3, window_bounds = array<i64: 32, 2>}, {pipeline_mode = #tpu.pipeline_mode<synchronous>, transform_indices = @transform_4, window_bounds = array<i64: 1, 2>}, {pipeline_mode = #tpu.pipeline_mode<synchronous>, transform_indices = @transform_5, window_bounds = array<i64: 2, 2>}]} {
    %c0 = arith.constant 0 : index
    %c0_0 = arith.constant 0 : index
    %0 = vector.load %arg1[%c0, %c0_0] : memref<2x32xbf16, #tpu.memory_space<vmem>>, vector<2x32xbf16>
    %c0_1 = arith.constant 0 : index
    %c0_2 = arith.constant 0 : index
    %1 = vector.load %arg2[%c0_1, %c0_2] : memref<32x32xbf16, #tpu.memory_space<vmem>>, vector<32x32xbf16>
    %cst = arith.constant dense<0.000000e+00> : vector<2x32xf32>
    %2 = tpu.matmul %0, %1, %cst {dimension_numbers = #tpu.dot_dimension_numbers<[1], [0], [0], [1], [0, 0, 1, 1], [], []>} : vector<2x32xbf16>, vector<32x32xbf16>, vector<2x32xf32> -> vector<2x32xf32>
    %c0_3 = arith.constant 0 : index
    %c0_4 = arith.constant 0 : index
    %3 = vector.load %arg3[%c0_3, %c0_4] : memref<1x32xf32, #tpu.memory_space<vmem>>, vector<1x32xf32>
    %4 = vector.broadcast %3 : vector<1x32xf32> to vector<2x32xf32>
    %5 = arith.addf %2, %4 : vector<2x32xf32>
    %6 = math.tanh %5 : vector<2x32xf32>
    %c0_5 = arith.constant 0 : index
    %c0_6 = arith.constant 0 : index
    %7 = vector.load %arg4[%c0_5, %c0_6] : memref<32x2xbf16, #tpu.memory_space<vmem>>, vector<32x2xbf16>
    %8 = arith.extf %7 : vector<32x2xbf16> to vector<32x2xf32>
    %cst_7 = arith.constant dense<0.000000e+00> : vector<2x2xf32>
    %9 = tpu.matmul %6, %8, %cst_7 {dimension_numbers = #tpu.dot_dimension_numbers<[1], [0], [0], [1], [0, 0, 1, 1], [], []>} : vector<2x32xf32>, vector<32x2xf32>, vector<2x2xf32> -> vector<2x2xf32>
    %c0_8 = arith.constant 0 : index
    %c0_9 = arith.constant 0 : index
    %10 = vector.load %arg5[%c0_8, %c0_9] : memref<1x2xf32, #tpu.memory_space<vmem>>, vector<1x2xf32>
    %11 = vector.broadcast %10 : vector<1x2xf32> to vector<2x2xf32>
    %12 = arith.addf %9, %11 : vector<2x2xf32>
    %c0_10 = arith.constant 0 : index
    %c0_11 = arith.constant 0 : index
    %13 = vector.load %arg6[%c0_10, %c0_11] : memref<2x2xf32, #tpu.memory_space<vmem>>, vector<2x2xf32>
    tpu.vector_store %arg6[%c0_10, %c0_11], %12 {strides = array<i32>} : memref<2x2xf32, #tpu.memory_space<vmem>>, vector<2x2xf32>,
    return
  }
  func.func @transform_0(%arg0: i32) -> (i32, i32) {
    %c0_i32 = arith.constant 0 : i32
    %c0_i32_0 = arith.constant 0 : i32
    %c0_i32_1 = arith.constant 0 : i32
    return %c0_i32, %c0_i32_0 : i32, i32
  }
  func.func @transform_1(%arg0: i32) -> (i32, i32) {
    %c0_i32 = arith.constant 0 : i32
    %c0_i32_0 = arith.constant 0 : i32
    %c0_i32_1 = arith.constant 0 : i32
    return %c0_i32, %c0_i32_0 : i32, i32
  }
  func.func @transform_2(%arg0: i32) -> (i32, i32) {
    %c0_i32 = arith.constant 0 : i32
    %c0_i32_0 = arith.constant 0 : i32
    %c0_i32_1 = arith.constant 0 : i32
    return %c0_i32, %c0_i32_0 : i32, i32
  }
  func.func @transform_3(%arg0: i32) -> (i32, i32) {
    %c0_i32 = arith.constant 0 : i32
    %c0_i32_0 = arith.constant 0 : i32
    %c0_i32_1 = arith.constant 0 : i32
    return %c0_i32, %c0_i32_0 : i32, i32
  }
  func.func @transform_4(%arg0: i32) -> (i32, i32) {
    %c0_i32 = arith.constant 0 : i32
    %c0_i32_0 = arith.constant 0 : i32
    %c0_i32_1 = arith.constant 0 : i32
    return %c0_i32, %c0_i32_0 : i32, i32
  }
  func.func @transform_5(%arg0: i32) -> (i32, i32) {
    %c0_i32 = arith.constant 0 : i32
    %c0_i32_0 = arith.constant 0 : i32
    %c0_i32_1 = arith.constant 0 : i32
    return %c0_i32, %c0_i32_0 : i32, i32
  }
}

module attributes {stable_mosaic.version = 11 : i64} {
  func.func @_dense_resident_kernel(%arg0: i32, %arg1: memref<16x32xbf16, #tpu.memory_space<vmem>>, %arg2: memref<32x64xbf16, #tpu.memory_space<vmem>>, %arg3: memref<1x64xf32, #tpu.memory_space<vmem>>, %arg4: memref<16x64xbf16, #tpu.memory_space<vmem>>) attributes {dimension_semantics = [#tpu.dimension_semantics<parallel>], iteration_bounds = array<i64: 1>, scalar_prefetch = 0 : i64, scratch_operands = 0 : i64, tpu.core_type = #tpu.core_type<tc>, window_params = [{transform_indices = @transform_0, window_bounds = array<i64: 16, 32>}, {pipeline_mode = #tpu.pipeline_mode<synchronous>, transform_indices = @transform_1, window_bounds = array<i64: 32, 64>}, {pipeline_mode = #tpu.pipeline_mode<synchronous>, transform_indices = @transform_2, window_bounds = array<i64: 1, 64>}, {transform_indices = @transform_3, window_bounds = array<i64: 16, 64>}]} {
    %c0 = arith.constant 0 : index
    %c0_0 = arith.constant 0 : index
    %0 = vector.load %arg1[%c0, %c0_0] : memref<16x32xbf16, #tpu.memory_space<vmem>>, vector<16x32xbf16>
    %c0_1 = arith.constant 0 : index
    %c0_2 = arith.constant 0 : index
    %1 = vector.load %arg2[%c0_1, %c0_2] : memref<32x64xbf16, #tpu.memory_space<vmem>>, vector<32x64xbf16>
    %cst = arith.constant dense<0.000000e+00> : vector<16x64xf32>
    %2 = tpu.matmul %0, %1, %cst {dimension_numbers = #tpu.dot_dimension_numbers<[1], [0], [0], [1], [0, 0, 1, 1], [], []>} : vector<16x32xbf16>, vector<32x64xbf16>, vector<16x64xf32> -> vector<16x64xf32>
    %c0_3 = arith.constant 0 : index
    %c0_4 = arith.constant 0 : index
    %3 = vector.load %arg3[%c0_3, %c0_4] : memref<1x64xf32, #tpu.memory_space<vmem>>, vector<1x64xf32>
    %4 = vector.broadcast %3 : vector<1x64xf32> to vector<16x64xf32>
    %5 = arith.addf %2, %4 : vector<16x64xf32>
    %cst_5 = arith.constant 5.000000e-01 : f32
    %6 = vector.broadcast %cst_5 : f32 to vector<16x64xf32>
    %7 = arith.mulf %6, %5 : vector<16x64xf32>
    %cst_6 = arith.constant 0.707106769 : f32
    %8 = vector.broadcast %cst_6 : f32 to vector<16x64xf32>
    %9 = arith.mulf %5, %8 : vector<16x64xf32>
    %10 = math.erf %9 : vector<16x64xf32>
    %cst_7 = arith.constant 1.000000e+00 : f32
    %11 = vector.broadcast %cst_7 : f32 to vector<16x64xf32>
    %12 = arith.addf %11, %10 : vector<16x64xf32>
    %13 = arith.mulf %7, %12 : vector<16x64xf32>
    %14 = arith.truncf %13 : vector<16x64xf32> to vector<16x64xbf16>
    %c0_8 = arith.constant 0 : index
    %c0_9 = arith.constant 0 : index
    %15 = vector.load %arg4[%c0_8, %c0_9] : memref<16x64xbf16, #tpu.memory_space<vmem>>, vector<16x64xbf16>
    tpu.vector_store %arg4[%c0_8, %c0_9], %14 {strides = array<i32>} : memref<16x64xbf16, #tpu.memory_space<vmem>>, vector<16x64xbf16>,
    return
  }
  func.func @transform_0(%arg0: i32) -> (i32, i32) {
    %c0_i32 = arith.constant 0 : i32
    %c0_i32_0 = arith.constant 0 : i32
    return %arg0, %c0_i32 : i32, i32
  }
  func.func @transform_1(%arg0: i32) -> (i32, i32) {
    %c0_i32 = arith.constant 0 : i32
    %c0_i32_0 = arith.constant 0 : i32
    %c0_i32_1 = arith.constant 0 : i32
    return %c0_i32, %c0_i32_0 : i32, i32
  }
  func.func @transform_2(%arg0: i32) -> (i32, i32) {
    %c0_i32 = arith.constant 0 : i32
    %c0_i32_0 = arith.constant 0 : i32
    %c0_i32_1 = arith.constant 0 : i32
    return %c0_i32, %c0_i32_0 : i32, i32
  }
  func.func @transform_3(%arg0: i32) -> (i32, i32) {
    %c0_i32 = arith.constant 0 : i32
    %c0_i32_0 = arith.constant 0 : i32
    return %arg0, %c0_i32 : i32, i32
  }
}

</mosaic_0001>

<llo_original>
// kernel: _lambda_.14
$region0: #{_lambda_.14}
  #allocation0 [shape = 'u32[]', space=smem, size = 0x4, offset = 0x4, fixed_abs, tag = 'smem constant byte address 0x4 - core index']
  #allocation1 [shape = 'u32[144,128]{1,0:T(1,128)}', space=vmem, size = 0x12000, scoped, tag = 'internal scratch']
  %s0 = inlined_call_operand.vmem [shape: bf16[2,8,96], index: 0, kind: input, shape index: {}]
  %s1 = inlined_call_operand.vmem [shape: f32[2,1,8], index: 1, kind: input, shape index: {}]
  %s2 = inlined_call_operand.vmem [shape: bf16[2,8,32], index: 2, kind: output, shape index: {}]
  %s3 = sld [smem:[#allocation0]]
  $region41: #{_lambda_.14} parent=0
    _
  %s5 = ssub.s32 1, %s3
  %s6 = scalar_select 0, %s5, %s3
  loop: start=0, step=1, limit=4
  $region2: #{_lambda_.14} parent=0 // loop_pre_header
    _
  $region3: #{_lambda_.14} parent=0 // loop_header
    %s8 = sphi 0, %s12
    %p9 = scmp.ge.s32.totalorder %s8, 4
    %s15 = sphi 0, %s27
    %s16 = sphi 0, %s23
    %s17 = sphi 0, %s15
    %s18 = sphi 0, %s16
    %s19 = sphi 0, %s17
    %s20 = sphi 0, %s18
    %s32 = sphi 0, %s34
    %s35 = sphi 0, %s32
    %s36 = sphi 0, %s35
    %s52 = sphi 0, %s36
    %s58 = sphi 0, %s60
    %s61 = sphi 0, %s58
    %s62 = sphi 0, %s61
    %s78 = sphi 0, %s62
    %s86 = sphi 0, %s88
    %s89 = sphi 0, %s86
    %s90 = sphi 0, %s89
    %s106 = sphi 0, %s90
  $region4: #{_lambda_.14} parent=0 // loop_header_branch
    %11 = sbr.rel (%p9) target = $region8
  $region5: #{_lambda_.14} parent=0 // loop_body
    %s13 = ssub.s32 %s8, 1
    %s14 = ssub.s32 %s8, 2
    %s21 = sadd.s32 1, %s16
    %p22 = scmp.ge.s32.totalorder %s21, 1
    %s23 = scalar_select %p22, 0, %s21
    %s24 = sadd.s32 1, %s15
    %s25 = scalar_select %p22, %s24, %s15
    %p26 = scmp.ge.s32.totalorder %s25, 2
    %s27 = scalar_select %p26, 0, %s25
    %s28 = ssub.s32 %s15, %s27
    %s29 = ssub.s32 %s16, %s23
    %s30 = sor.u32 %s28, %s29
    %p31 = scmp.eq.s32.totalorder %s30, 0
    %s33 = sadd.s32 %s32, 1
    %s34 = scalar_select %p31, %s32, %s33
    %p37 = pneg %p31
    %p38 = scmp.eq.s32.totalorder %s8, 1
    %p39 = por %p37, %p38
    %p40 = scmp.ne.s32.totalorder %s32, %s35
    %p41 = scmp.eq.s32.totalorder %s8, 0
    %p42 = por %p40, %p41
    %p43 = scmp.ne.s32.totalorder %s32, %s35
    %p44 = scmp.eq.s32.totalorder %s13, 1
    %p45 = por %p43, %p44
    %p46 = scmp.ne.s32.totalorder %s35, %s36
    %p47 = scmp.eq.s32.totalorder %s13, 0
    %p48 = por %p46, %p47
    %p49 = scmp.ne.s32.totalorder %s35, %s36
    %p50 = scmp.eq.s32.totalorder %s14, 1
    %p51 = por %p49, %p50
    %p53 = scmp.ne.s32.totalorder %s36, %s52
    %p54 = scmp.eq.s32.totalorder %s14, 0
    %p55 = por %p53, %p54
    %s56 = ssub.s32 %s15, %s27
    %p57 = scmp.eq.s32.totalorder %s56, 0
    %s59 = sadd.s32 %s58, 1
    %s60 = scalar_select %p57, %s58, %s59
    %p63 = pneg %p57
    %p64 = scmp.eq.s32.totalorder %s8, 1
    %p65 = por %p63, %p64
    %p66 = scmp.ne.s32.totalorder %s58, %s61
    %p67 = scmp.eq.s32.totalorder %s8, 0
    %p68 = por %p66, %p67
    %p69 = scmp.ne.s32.totalorder %s58, %s61
    %p70 = scmp.eq.s32.totalorder %s13, 1
    %p71 = por %p69, %p70
    %p72 = scmp.ne.s32.totalorder %s61, %s62
    %p73 = scmp.eq.s32.totalorder %s13, 0
    %p74 = por %p72, %p73
    %p75 = scmp.ne.s32.totalorder %s61, %s62
    %p76 = scmp.eq.s32.totalorder %s14, 1
    %p77 = por %p75, %p76
    %p79 = scmp.ne.s32.totalorder %s62, %s78
    %p80 = scmp.eq.s32.totalorder %s14, 0
    %p81 = por %p79, %p80
    %s82 = ssub.s32 %s15, %s27
    %s83 = ssub.s32 %s16, %s23
    %s84 = sor.u32 %s82, %s83
    %p85 = scmp.eq.s32.totalorder %s84, 0
    %s87 = sadd.s32 %s86, 1
    %s88 = scalar_select %p85, %s86, %s87
    %p91 = pneg %p85
    %p92 = scmp.eq.s32.totalorder %s8, 1
    %p93 = por %p91, %p92
    %p94 = scmp.ne.s32.totalorder %s86, %s89
    %p95 = scmp.eq.s32.totalorder %s8, 0
    %p96 = por %p94, %p95
    %p97 = scmp.ne.s32.totalorder %s86, %s89
    %p98 = scmp.eq.s32.totalorder %s13, 1
    %p99 = por %p97, %p98
    %p100 = scmp.ne.s32.totalorder %s89, %s90
    %p101 = scmp.eq.s32.totalorder %s13, 0
    %p102 = por %p100, %p101
    %p103 = scmp.ne.s32.totalorder %s89, %s90
    %p104 = scmp.eq.s32.totalorder %s14, 1
    %p105 = por %p103, %p104
    %p107 = scmp.ne.s32.totalorder %s90, %s106
    %p108 = scmp.eq.s32.totalorder %s14, 0
    %p109 = por %p107, %p108
    %p110 = scmp.le.s32.totalorder 1, %s8
    %p111 = scmp.lt.s32.totalorder %s8, 3
    %p112 = pnand %p110, %p111
    %p113 = pneg %p112
    // Predicated region
    $region9: #{_lambda_.14} parent=5 // pred_check
      _
    $region10: #{_lambda_.14} parent=5 // pred_check_branch
      %115 = sbr.rel (%p112) target = $region12
    $region11: #{_lambda_.14} parent=5 // pred_region
      %s116 = ssub.s32 %s8, 1
    $region12: #{_lambda_.14} parent=5 // pred_fallthru
      _
    %p117 = scmp.lt.s32.totalorder %s8, 2
    // Predicated region
    $region13: #{_lambda_.14} parent=5 // pred_check
      %p118 = pneg %p117
    $region14: #{_lambda_.14} parent=5 // pred_check_branch
      %120 = sbr.rel (%p118) target = $region16
    $region15: #{_lambda_.14} parent=5 // pred_region
      // Predicated region
      $region17: #{_lambda_.14} parent=15 // pred_check
        %p121 = pneg %p42
      $region18: #{_lambda_.14} parent=15 // pred_check_branch
        %123 = sbr.rel (%p121) target = $region20
      $region19: #{_lambda_.14} parent=15 // pred_region
        %p124 = scmp.lt.s32.totalorder %s15, 1
        %s125 = scalar_select %p124, %s15, 1
        %p126 = scmp.lt.s32.totalorder %s16, 0
        %s127 = scalar_select %p126, %s16, 0
        %s128 = sadd.s32 %s127, %s125
        %s129 = smul.addr %s128, 4
        %s130 = scalar_lea.vmem %s0, %s129
      $region20: #{_lambda_.14} parent=15 // pred_fallthru
        _
      // Predicated region
      $region21: #{_lambda_.14} parent=15 // pred_check
        %p131 = pneg %p68
      $region22: #{_lambda_.14} parent=15 // pred_check_branch
        %133 = sbr.rel (%p131) target = $region24
      $region23: #{_lambda_.14} parent=15 // pred_region
        %p134 = scmp.lt.s32.totalorder %s15, 1
        %s135 = scalar_select %p134, %s15, 1
        %s136 = scalar_lea.vmem %s1, %s135
      $region24: #{_lambda_.14} parent=15 // pred_fallthru
        _
    $region16: #{_lambda_.14} parent=5 // pred_fallthru
      _
    %p137 = scmp.le.s32.totalorder 1, %s8
    %p138 = scmp.lt.s32.totalorder %s8, 3
    %p139 = pnand %p137, %p138
    %p140 = pneg %p139
    // Predicated region
    $region25: #{_lambda_.14} parent=5 // pred_check
      _
    $region26: #{_lambda_.14} parent=5 // pred_check_branch
      %142 = sbr.rel (%p139) target = $region28
    $region27: #{_lambda_.14} parent=5 // pred_region
      %s143 = ssub.s32 %s8, 1
      %p144 = scmp.lt.s32.totalorder %s17, 1
      %s145 = scalar_select %p144, %s17, 1
      %p146 = scmp.lt.s32.totalorder %s18, 0
      %s147 = scalar_select %p146, %s18, 0
      %s148 = sadd.s32 %s147, %s145
      %s149 = smul.addr %s148, 4
      %s150 = scalar_lea.vmem %s0, %s149
      %p151 = pneg %p48
      %p152 = pneg %p45
      %p153 = scmp.lt.s32.totalorder %s17, 1
      %s154 = scalar_select %p153, %s17, 1
      %s155 = scalar_lea.vmem %s1, %s154
      %p156 = pneg %p74
      %p157 = pneg %p71
      %p158 = pneg %p102
      %p159 = pneg %p99
      %p160 = scmp.lt.s32.totalorder %s17, 1
      %s161 = scalar_select %p160, %s17, 1
      %p162 = scmp.lt.s32.totalorder %s18, 0
      %s163 = scalar_select %p162, %s18, 0
      %s164 = sadd.s32 %s163, %s161
      %s165 = smul.addr %s164, 4
      %s166 = scalar_lea.vmem %s2, %s165
      %p167 = scmp.lt.s32.totalorder %s17, 1
      %s168 = scalar_select %p167, %s17, 1
      %p169 = scmp.lt.s32.totalorder %s18, 0
      %s170 = scalar_select %p169, %s18, 0
      %s171 = sadd.s32 %s170, %s168
      %s172 = smul.addr %s171, 4
      %s173 = scalar_lea.vmem %s0, %s172
      %p174 = scmp.lt.s32.totalorder %s17, 1
      %s175 = scalar_select %p174, %s17, 1
      %s176 = scalar_lea.vmem %s1, %s175
      %p177 = scmp.lt.s32.totalorder %s17, 1
      %s178 = scalar_select %p177, %s17, 1
      %p179 = scmp.lt.s32.totalorder %s18, 0
      %s180 = scalar_select %p179, %s18, 0
      %s181 = sadd.s32 %s180, %s178
      %s182 = smul.addr %s181, 4
      %s183 = scalar_lea.vmem %s2, %s182
      %v185 = vld [vmem:[%s173] sm:$0xf]
      %v186 = vld [vmem:[%s176] sm:$0x1]
      %v188 = vunpack.c.l.b16 %v185
      %v189 = vpack.c.b16 %v188, %v188
      %190 = vrot.lane.b32.xlu0 %v189, 96
      %v191 = vpop.permute.xlu0 %190
      %vm192 = vcmask 130048
      %v194 = vsel %vm192, %v185, 0
      %v197 = vsel %vm192, %v191, 0
      %199 = vmatprep.subr.bf16.mxu0 0
      %200 = vmatpush1.bf16.xpose.msra.mxu0 %v197
      %201 = vmatprep.subr.bf16.mxu0 0
      %202 = vmatpush1.bf16.xpose.msra.mxu0 0
      %203 = vmatprep.subr.bf16.mxu0 0
      %204 = vmatpush1.bf16.xpose.msra.mxu0 0
      %205 = vmatprep.subr.bf16.mxu0 0
      %206 = vmatpush1.bf16.xpose.msra.mxu0 0
      %207 = vmatprep.subr.bf16.mxu0 0
      %208 = vmatpush1.bf16.xpose.msra.mxu0 0
      %209 = vmatprep.subr.bf16.mxu0 0
      %210 = vmatpush1.bf16.xpose.msra.mxu0 0
      %211 = vmatprep.subr.bf16.mxu0 0
      %212 = vmatpush1.bf16.xpose.msra.mxu0 0
      %213 = vmatprep.subr.bf16.mxu0 0
      %214 = vmatpush1.bf16.xpose.msra.mxu0 0
      %215 = vmatprep.subr.bf16.mxu0 0
      %216 = vmatpush1.bf16.xpose.msra.mxu0 0
      %217 = vmatprep.subr.bf16.mxu0 0
      %218 = vmatpush1.bf16.xpose.msra.mxu0 0
      %219 = vmatprep.subr.bf16.mxu0 0
      %220 = vmatpush1.bf16.xpose.msra.mxu0 0
      %221 = vmatprep.subr.bf16.mxu0 0
      %222 = vmatpush1.bf16.xpose.msra.mxu0 0
      %223 = vmatprep.subr.bf16.mxu0 0
      %224 = vmatpush1.bf16.xpose.msra.mxu0 0
      %225 = vmatprep.subr.bf16.mxu0 0
      %226 = vmatpush1.bf16.xpose.msra.mxu0 0
      %227 = vmatprep.subr.bf16.mxu0 0
      %228 = vmatpush1.bf16.xpose.msra.mxu0 0
      %229 = vmatprep.subr.bf16.mxu0 0
      %230 = vmatpush1.bf16.xpose.msra.mxu0 0
      %231 = vmatprep.mubr.bf16.mxu0 0
      %232 = vmatmul.mubr.bf16.gmra.mrb[0].mxu0 %v194
      %v233 = vpop.f32.mrb[0].mxu0
      %v234 = vadd.f32 0.0, %v233
      %v235 = vpop.f32.mrb[0].mxu0
      %v236 = vpop.f32.mrb[0].mxu0
      %v237 = vpop.f32.mrb[0].mxu0
      %238 = vdwg.mxu0
      %v239 = vmul.f32 %v234, 0.25
      %v241 = vlaneseq
      %v242 = vshrl.u32 %v241, 7
      %v243 = vsub.s32 0, %v242
      %v244 = vrot.slane %v186, %v243
      %v246 = vadd.f32 %v239, %v244
      %vm247 = vcmask 64512
      %v248 = vsel %vm247, %v246, -inf
      %249 = vmax.xlane.f32.xlu0 %v248
      %v250 = vpop.xlane.xlu0 %249
      %v251 = vsub.f32 %v246, %v250
      %v252 = vmul.f32 %v251, 1.442695
      %v253 = vpow.pop %v252
      %v254 = vsel %vm247, %v253, 0.0
      %255 = vadd.xlane.f32.xlu0 %v254
      %v256 = vpop.xlane.xlu0 %255
      %v257 = vpack.c.bf16 %v253, %v253
      %258 = vrot.lane.b32.xlu0 %v189, 64
      %v259 = vpop.permute.xlu0 %258
      %v261 = vsel %vm247, %v257, 0
      %vm263 = vcmask 1043456
      %v265 = vsel %vm263, %v259, 0
      %267 = vmatprep.subr.bf16.mxu0 0
      %268 = vmatpush1.bf16.msra.mxu0 %v265
      %269 = vmatprep.subr.bf16.mxu0 0
      %270 = vmatpush1.bf16.msra.mxu0 0
      %271 = vmatprep.subr.bf16.mxu0 0
      %272 = vmatpush1.bf16.msra.mxu0 0
      %273 = vmatprep.subr.bf16.mxu0 0
      %274 = vmatpush1.bf16.msra.mxu0 0
      %275 = vmatprep.subr.bf16.mxu0 0
      %276 = vmatpush1.bf16.msra.mxu0 0
      %277 = vmatprep.subr.bf16.mxu0 0
      %278 = vmatpush1.bf16.msra.mxu0 0
      %279 = vmatprep.subr.bf16.mxu0 0
      %280 = vmatpush1.bf16.msra.mxu0 0
      %281 = vmatprep.subr.bf16.mxu0 0
      %282 = vmatpush1.bf16.msra.mxu0 0
      %283 = vmatprep.subr.bf16.mxu0 0
      %284 = vmatpush1.bf16.msra.mxu0 0
      %285 = vmatprep.subr.bf16.mxu0 0
      %286 = vmatpush1.bf16.msra.mxu0 0
      %287 = vmatprep.subr.bf16.mxu0 0
      %288 = vmatpush1.bf16.msra.mxu0 0
      %289 = vmatprep.subr.bf16.mxu0 0
      %290 = vmatpush1.bf16.msra.mxu0 0
      %291 = vmatprep.subr.bf16.mxu0 0
      %292 = vmatpush1.bf16.msra.mxu0 0
      %293 = vmatprep.subr.bf16.mxu0 0
      %294 = vmatpush1.bf16.msra.mxu0 0
      %295 = vmatprep.subr.bf16.mxu0 0
      %296 = vmatpush1.bf16.msra.mxu0 0
      %297 = vmatprep.subr.bf16.mxu0 0
      %298 = vmatpush1.bf16.msra.mxu0 0
      %299 = vmatprep.mubr.bf16.mxu0 0
      %300 = vmatmul.mubr.bf16.gmra.mrb[0].mxu0 %v261
      %v301 = vpop.f32.mrb[0].mxu0
      %v302 = vadd.f32 0.0, %v301
      %v303 = vpop.f32.mrb[0].mxu0
      %v304 = vpop.f32.mrb[0].mxu0
      %v305 = vpop.f32.mrb[0].mxu0
      %306 = vdwg.mxu0
      %v307 = vrcp.pop %v256
      %v308 = vmul.f32 %v302, %v307
      %v309 = vpack.c.bf16 %v308, %v308
      %vm310 = vcmask 125952
      %311 = vst.msk [vmem:[%s183] sm:$0xf] %vm310, %v309
      %312 = vrot.lane.b32.xlu0 %v189, 112
      %v313 = vpop.permute.xlu0 %312
      %314 = vrot.lane.b32.xlu0 %v189, 80
      %v315 = vpop.permute.xlu0 %314
      %v317 = vsel %vm192, %v313, 0
      %v320 = vsel %vm192, %v315, 0
      %322 = vmatprep.subr.bf16.mxu0 0
      %323 = vmatpush1.bf16.xpose.msra.mxu0 %v320
      %324 = vmatprep.subr.bf16.mxu0 0
      %325 = vmatpush1.bf16.xpose.msra.mxu0 0
      %326 = vmatprep.subr.bf16.mxu0 0
      %327 = vmatpush1.bf16.xpose.msra.mxu0 0
      %328 = vmatprep.subr.bf16.mxu0 0
      %329 = vmatpush1.bf16.xpose.msra.mxu0 0
      %330 = vmatprep.subr.bf16.mxu0 0
      %331 = vmatpush1.bf16.xpose.msra.mxu0 0
      %332 = vmatprep.subr.bf16.mxu0 0
      %333 = vmatpush1.bf16.xpose.msra.mxu0 0
      %334 = vmatprep.subr.bf16.mxu0 0
      %335 = vmatpush1.bf16.xpose.msra.mxu0 0
      %336 = vmatprep.subr.bf16.mxu0 0
      %337 = vmatpush1.bf16.xpose.msra.mxu0 0
      %338 = vmatprep.subr.bf16.mxu0 0
      %339 = vmatpush1.bf16.xpose.msra.mxu0 0
      %340 = vmatprep.subr.bf16.mxu0 0
      %341 = vmatpush1.bf16.xpose.msra.mxu0 0
      %342 = vmatprep.subr.bf16.mxu0 0
      %343 = vmatpush1.bf16.xpose.msra.mxu0 0
      %344 = vmatprep.subr.bf16.mxu0 0
      %345 = vmatpush1.bf16.xpose.msra.mxu0 0
      %346 = vmatprep.subr.bf16.mxu0 0
      %347 = vmatpush1.bf16.xpose.msra.mxu0 0
      %348 = vmatprep.subr.bf16.mxu0 0
      %349 = vmatpush1.bf16.xpose.msra.mxu0 0
      %350 = vmatprep.subr.bf16.mxu0 0
      %351 = vmatpush1.bf16.xpose.msra.mxu0 0
      %352 = vmatprep.subr.bf16.mxu0 0
      %353 = vmatpush1.bf16.xpose.msra.mxu0 0
      %354 = vmatprep.mubr.bf16.mxu0 0
      %355 = vmatmul.mubr.bf16.gmra.mrb[0].mxu0 %v317
      %v356 = vpop.f32.mrb[0].mxu0
      %v357 = vadd.f32 0.0, %v356
      %v358 = vpop.f32.mrb[0].mxu0
      %v359 = vpop.f32.mrb[0].mxu0
      %v360 = vpop.f32.mrb[0].mxu0
      %361 = vdwg.mxu0
      %v362 = vmul.f32 %v357, 0.25
      %v363 = vadd.f32 %v362, %v244
      %v364 = vsel %vm247, %v363, -inf
      %365 = vmax.xlane.f32.xlu0 %v364
      %v366 = vpop.xlane.xlu0 %365
      %v367 = vsub.f32 %v363, %v366
      %v368 = vmul.f32 %v367, 1.442695
      %v369 = vpow.pop %v368
      %v370 = vsel %vm247, %v369, 0.0
      %371 = vadd.xlane.f32.xlu0 %v370
      %v372 = vpop.xlane.xlu0 %371
      %v373 = vpack.c.bf16 %v369, %v369
      %374 = vrot.lane.b32.xlu0 %v189, 48
      %v375 = vpop.permute.xlu0 %374
      %v377 = vsel %vm247, %v373, 0
      %v380 = vsel %vm263, %v375, 0
      %382 = vmatprep.subr.bf16.mxu0 0
      %383 = vmatpush1.bf16.msra.mxu0 %v380
      %384 = vmatprep.subr.bf16.mxu0 0
      %385 = vmatpush1.bf16.msra.mxu0 0
      %386 = vmatprep.subr.bf16.mxu0 0
      %387 = vmatpush1.bf16.msra.mxu0 0
      %388 = vmatprep.subr.bf16.mxu0 0
      %389 = vmatpush1.bf16.msra.mxu0 0
      %390 = vmatprep.subr.bf16.mxu0 0
      %391 = vmatpush1.bf16.msra.mxu0 0
      %392 = vmatprep.subr.bf16.mxu0 0
      %393 = vmatpush1.bf16.msra.mxu0 0
      %394 = vmatprep.subr.bf16.mxu0 0
      %395 = vmatpush1.bf16.msra.mxu0 0
      %396 = vmatprep.subr.bf16.mxu0 0
      %397 = vmatpush1.bf16.msra.mxu0 0
      %398 = vmatprep.subr.bf16.mxu0 0
      %399 = vmatpush1.bf16.msra.mxu0 0
      %400 = vmatprep.subr.bf16.mxu0 0
      %401 = vmatpush1.bf16.msra.mxu0 0
      %402 = vmatprep.subr.bf16.mxu0 0
      %403 = vmatpush1.bf16.msra.mxu0 0
      %404 = vmatprep.subr.bf16.mxu0 0
      %405 = vmatpush1.bf16.msra.mxu0 0
      %406 = vmatprep.subr.bf16.mxu0 0
      %407 = vmatpush1.bf16.msra.mxu0 0
      %408 = vmatprep.subr.bf16.mxu0 0
      %409 = vmatpush1.bf16.msra.mxu0 0
      %410 = vmatprep.subr.bf16.mxu0 0
      %411 = vmatpush1.bf16.msra.mxu0 0
      %412 = vmatprep.subr.bf16.mxu0 0
      %413 = vmatpush1.bf16.msra.mxu0 0
      %414 = vmatprep.mubr.bf16.mxu0 0
      %415 = vmatmul.mubr.bf16.gmra.mrb[0].mxu0 %v377
      %v416 = vpop.f32.mrb[0].mxu0
      %v417 = vadd.f32 0.0, %v416
      %v418 = vpop.f32.mrb[0].mxu0
      %v419 = vpop.f32.mrb[0].mxu0
      %v420 = vpop.f32.mrb[0].mxu0
      %421 = vdwg.mxu0
      %v422 = vrcp.pop %v372
      %v423 = vmul.f32 %v417, %v422
      %v424 = vpack.c.bf16 %v423, %v423
      %v426 = vunpack.c.l.b16 %v424
      %v427 = vpack.c.b16 %v426, %v426
      %428 = vrot.lane.b32.xlu0 %v427, 16
      %v429 = vpop.permute.xlu0 %428
      %vm431 = vcmask 257152
      %432 = vst.msk [vmem:[%s183] sm:$0xf] %vm431, %v429
      %p433 = scmp.lt.s32.totalorder %s17, 1
      %s434 = scalar_select %p433, %s17, 1
      %p435 = scmp.lt.s32.totalorder %s18, 0
      %s436 = scalar_select %p435, %s18, 0
      %s437 = sadd.s32 %s436, %s434
      %s438 = smul.addr %s437, 4
      %s439 = scalar_lea.vmem %s2, %s438
      // Predicated region
      $region29: #{_lambda_.14} parent=27 // pred_check
        %p440 = pneg %p99
      $region30: #{_lambda_.14} parent=27 // pred_check_branch
        %442 = sbr.rel (%p440) target = $region32
      $region31: #{_lambda_.14} parent=27 // pred_region
        _
      $region32: #{_lambda_.14} parent=27 // pred_fallthru
        _
    $region28: #{_lambda_.14} parent=5 // pred_fallthru
      _
    %p443 = scmp.le.s32.totalorder 2, %s8
    // Predicated region
    $region33: #{_lambda_.14} parent=5 // pred_check
      %p444 = pneg %p443
    $region34: #{_lambda_.14} parent=5 // pred_check_branch
      %446 = sbr.rel (%p444) target = $region36
    $region35: #{_lambda_.14} parent=5 // pred_region
      %s447 = ssub.s32 %s8, 2
      // Predicated region
      $region37: #{_lambda_.14} parent=35 // pred_check
        %p448 = pneg %p105
      $region38: #{_lambda_.14} parent=35 // pred_check_branch
        %450 = sbr.rel (%p448) target = $region40
      $region39: #{_lambda_.14} parent=35 // pred_region
        %p451 = scmp.lt.s32.totalorder %s19, 1
        %s452 = scalar_select %p451, %s19, 1
        %p453 = scmp.lt.s32.totalorder %s20, 0
        %s454 = scalar_select %p453, %s20, 0
        %s455 = sadd.s32 %s454, %s452
        %s456 = smul.addr %s455, 4
        %s457 = scalar_lea.vmem %s2, %s456
      $region40: #{_lambda_.14} parent=35 // pred_fallthru
        _
    $region36: #{_lambda_.14} parent=5 // pred_fallthru
      _
  $region6: #{_lambda_.14} parent=0 // loop_footer
    %s12 = sadd.s32 1, %s8
  $region7: #{_lambda_.14} parent=0 // loop_footer_branch
    %7 = sbr.rel target = $region3
  $region8: #{_lambda_.14} parent=0 // loop_exit
    _

// kernel: _lambda_.13
$region0: #{_lambda_.13}
  #allocation0 [shape = 'u32[]', space=smem, size = 0x4, offset = 0x4, fixed_abs, tag = 'smem constant byte address 0x4 - core index']
  #allocation1 [shape = 'u32[144,128]{1,0:T(1,128)}', space=vmem, size = 0x12000, scoped, tag = 'internal scratch']
  %s0 = inlined_call_operand.vmem [shape: bf16[16,32], index: 0, kind: input, shape index: {}]
  %s1 = inlined_call_operand.vmem [shape: bf16[32,96], index: 1, kind: input, shape index: {}]
  %s2 = inlined_call_operand.vmem [shape: f32[1,96], index: 2, kind: input, shape index: {}]
  %s3 = inlined_call_operand.vmem [shape: bf16[16,96], index: 3, kind: output, shape index: {}]
  %s4 = sld [smem:[#allocation0]]
  $region22: #{_lambda_.13} parent=0
    _
  %s6 = ssub.s32 1, %s4
  %s7 = scalar_select 0, %s6, %s4
  // Predicated region
  $region2: #{_lambda_.13} parent=0 // pred_check
    _
  $region3: #{_lambda_.13} parent=0 // pred_check_branch
    %9 = sbr.rel (0) target = $region5
  $region4: #{_lambda_.13} parent=0 // pred_region
    _
  $region5: #{_lambda_.13} parent=0 // pred_fallthru
    _
  // Predicated region
  $region6: #{_lambda_.13} parent=0 // pred_check
    _
  $region7: #{_lambda_.13} parent=0 // pred_check_branch
    %11 = sbr.rel (0) target = $region9
  $region8: #{_lambda_.13} parent=0 // pred_region
    _
  $region9: #{_lambda_.13} parent=0 // pred_fallthru
    _
  // Predicated region
  $region10: #{_lambda_.13} parent=0 // pred_check
    _
  $region11: #{_lambda_.13} parent=0 // pred_check_branch
    %13 = sbr.rel (0) target = $region13
  $region12: #{_lambda_.13} parent=0 // pred_region
    _
  $region13: #{_lambda_.13} parent=0 // pred_fallthru
    _
  %v15 = vld [vmem:[%s0] sm:$0xf]
  %v16 = vld [vmem:[%s0 + $0x4] sm:$0xf]
  %v17 = vld [vmem:[%s1] sm:$0xf]
  %v18 = vld [vmem:[%s1 + $0x4] sm:$0xf]
  %v19 = vld [vmem:[%s1 + $0x8] sm:$0xf]
  %v20 = vld [vmem:[%s1 + $0xc] sm:$0xf]
  %v21 = vld [vmem:[%s2] sm:$0x1]
  %v23 = vlaneseq
  %v24 = vshrl.u32 %v23, 7
  %v25 = vsub.s32 0, %v24
  %v26 = vrot.slane %v21, %v25
  %v30 = vunpack.c.l.b16 %v15
  %v31 = vunpack.c.l.b16 %v16
  %v32 = vpack.c.b16 %v31, %v30
  %v37 = vunpack.c.l.b16 %v17
  %v38 = vunpack.c.l.b16 %v18
  %v39 = vunpack.c.l.b16 %v19
  %v40 = vunpack.c.l.b16 %v20
  %v41 = vpack.c.b16 %v38, %v37
  %v42 = vpack.c.b16 %v40, %v39
  %vm45 = vcmask 261120
  %v47 = vsel %vm45, %v32, 0
  %49 = vmatprep.subr.bf16.mxu0 0
  %50 = vmatpush1.bf16.msra.mxu0 %v41
  %51 = vmatprep.subr.bf16.mxu0 0
  %52 = vmatpush1.bf16.msra.mxu0 %v42
  %53 = vmatprep.subr.bf16.mxu0 0
  %54 = vmatpush1.bf16.msra.mxu0 0
  %55 = vmatprep.subr.bf16.mxu0 0
  %56 = vmatpush1.bf16.msra.mxu0 0
  %57 = vmatprep.subr.bf16.mxu0 0
  %58 = vmatpush1.bf16.msra.mxu0 0
  %59 = vmatprep.subr.bf16.mxu0 0
  %60 = vmatpush1.bf16.msra.mxu0 0
  %61 = vmatprep.subr.bf16.mxu0 0
  %62 = vmatpush1.bf16.msra.mxu0 0
  %63 = vmatprep.subr.bf16.mxu0 0
  %64 = vmatpush1.bf16.msra.mxu0 0
  %65 = vmatprep.subr.bf16.mxu0 0
  %66 = vmatpush1.bf16.msra.mxu0 0
  %67 = vmatprep.subr.bf16.mxu0 0
  %68 = vmatpush1.bf16.msra.mxu0 0
  %69 = vmatprep.subr.bf16.mxu0 0
  %70 = vmatpush1.bf16.msra.mxu0 0
  %71 = vmatprep.subr.bf16.mxu0 0
  %72 = vmatpush1.bf16.msra.mxu0 0
  %73 = vmatprep.subr.bf16.mxu0 0
  %74 = vmatpush1.bf16.msra.mxu0 0
  %75 = vmatprep.subr.bf16.mxu0 0
  %76 = vmatpush1.bf16.msra.mxu0 0
  %77 = vmatprep.subr.bf16.mxu0 0
  %78 = vmatpush1.bf16.msra.mxu0 0
  %79 = vmatprep.subr.bf16.mxu0 0
  %80 = vmatpush1.bf16.msra.mxu0 0
  %81 = vmatprep.mubr.bf16.mxu0 0
  %82 = vmatmul.mubr.bf16.gmra.mrb[0].mxu0 %v47
  %v83 = vpop.f32.mrb[0].mxu0
  %v84 = vadd.f32 %v26, %v83
  %v85 = vpop.f32.mrb[0].mxu0
  %v86 = vpop.f32.mrb[0].mxu0
  %v87 = vadd.f32 %v26, %v86
  %v88 = vpop.f32.mrb[0].mxu0
  %89 = vdwg.mxu0
  %v90 = vpack.c.bf16 %v87, %v84
  %v92 = vunpack.c.l.b16 %v90
  %v93 = vunpack.c.h.b16 %v90
  %v94 = vpack.c.b16 %v92, %v92
  %v95 = vpack.c.b16 %v93, %v93
  %vm98 = vcmask 781312
  %99 = vst.msk [vmem:[%s3] sm:$0xf] %vm98, %v94
  %100 = vst.msk [vmem:[%s3 + $0x4] sm:$0xf] %vm98, %v95
  // Predicated region
  $region14: #{_lambda_.13} parent=0 // pred_check
    _
  $region15: #{_lambda_.13} parent=0 // pred_check_branch
    %102 = sbr.rel (0) target = $region17
  $region16: #{_lambda_.13} parent=0 // pred_region
    _
  $region17: #{_lambda_.13} parent=0 // pred_fallthru
    _
  // Predicated region
  $region18: #{_lambda_.13} parent=0 // pred_check
    _
  $region19: #{_lambda_.13} parent=0 // pred_check_branch
    %104 = sbr.rel (0) target = $region21
  $region20: #{_lambda_.13} parent=0 // pred_region
    _
  $region21: #{_lambda_.13} parent=0 // pred_fallthru
    _

// kernel: _lambda_.12
$region0: #{_lambda_.12}
  #allocation0 [shape = 'u32[]', space=smem, size = 0x4, offset = 0x4, fixed_abs, tag = 'smem constant byte address 0x4 - core index']
  #allocation1 [shape = 'u32[144,128]{1,0:T(1,128)}', space=vmem, size = 0x12000, scoped, tag = 'internal scratch']
  %s0 = inlined_call_operand.vmem [shape: f32[2,8,32], index: 0, kind: input, shape index: {}]
  %s1 = inlined_call_operand.vmem [shape: f32[8,32], index: 1, kind: input, shape index: {}]
  %s2 = inlined_call_operand.vmem [shape: f32[1,32], index: 2, kind: input, shape index: {}]
  %s3 = inlined_call_operand.vmem [shape: f32[1,32], index: 3, kind: input, shape index: {}]
  %s4 = inlined_call_operand.vmem [shape: f32[1,32], index: 4, kind: input, shape index: {}]
  %s5 = inlined_call_operand.vmem [shape: bf16[2,8,32], index: 5, kind: output, shape index: {}]
  %s6 = sld [smem:[#allocation0]]
  $region53: #{_lambda_.12} parent=0
    _
  %s8 = ssub.s32 1, %s6
  %s9 = scalar_select 0, %s8, %s6
  loop: start=0, step=1, limit=4
  $region2: #{_lambda_.12} parent=0 // loop_pre_header
    _
  $region3: #{_lambda_.12} parent=0 // loop_header
    %s11 = sphi 0, %s15
    %p12 = scmp.ge.s32.totalorder %s11, 4
    %s18 = sphi 0, %s30
    %s19 = sphi 0, %s26
    %s20 = sphi 0, %s18
    %s21 = sphi 0, %s19
    %s22 = sphi 0, %s20
    %s23 = sphi 0, %s21
    %s35 = sphi 0, %s37
    %s38 = sphi 0, %s35
    %s39 = sphi 0, %s38
    %s55 = sphi 0, %s39
    %s61 = sphi 0, %s63
    %s64 = sphi 0, %s61
    %s65 = sphi 0, %s64
    %s81 = sphi 0, %s65
    %s85 = sphi 0, %s85
    %s87 = sphi 0, %s85
    %s88 = sphi 0, %s87
    %s102 = sphi 0, %s88
    %s106 = sphi 0, %s106
    %s108 = sphi 0, %s106
    %s109 = sphi 0, %s108
    %s123 = sphi 0, %s109
    %s127 = sphi 0, %s127
    %s129 = sphi 0, %s127
    %s130 = sphi 0, %s129
    %s144 = sphi 0, %s130
    %s152 = sphi 0, %s154
    %s155 = sphi 0, %s152
    %s156 = sphi 0, %s155
    %s172 = sphi 0, %s156
  $region4: #{_lambda_.12} parent=0 // loop_header_branch
    %14 = sbr.rel (%p12) target = $region8
  $region5: #{_lambda_.12} parent=0 // loop_body
    %s16 = ssub.s32 %s11, 1
    %s17 = ssub.s32 %s11, 2
    %s24 = sadd.s32 1, %s19
    %p25 = scmp.ge.s32.totalorder %s24, 1
    %s26 = scalar_select %p25, 0, %s24
    %s27 = sadd.s32 1, %s18
    %s28 = scalar_select %p25, %s27, %s18
    %p29 = scmp.ge.s32.totalorder %s28, 2
    %s30 = scalar_select %p29, 0, %s28
    %s31 = ssub.s32 %s18, %s30
    %s32 = ssub.s32 %s19, %s26
    %s33 = sor.u32 %s31, %s32
    %p34 = scmp.eq.s32.totalorder %s33, 0
    %s36 = sadd.s32 %s35, 1
    %s37 = scalar_select %p34, %s35, %s36
    %p40 = pneg %p34
    %p41 = scmp.eq.s32.totalorder %s11, 1
    %p42 = por %p40, %p41
    %p43 = scmp.ne.s32.totalorder %s35, %s38
    %p44 = scmp.eq.s32.totalorder %s11, 0
    %p45 = por %p43, %p44
    %p46 = scmp.ne.s32.totalorder %s35, %s38
    %p47 = scmp.eq.s32.totalorder %s16, 1
    %p48 = por %p46, %p47
    %p49 = scmp.ne.s32.totalorder %s38, %s39
    %p50 = scmp.eq.s32.totalorder %s16, 0
    %p51 = por %p49, %p50
    %p52 = scmp.ne.s32.totalorder %s38, %s39
    %p53 = scmp.eq.s32.totalorder %s17, 1
    %p54 = por %p52, %p53
    %p56 = scmp.ne.s32.totalorder %s39, %s55
    %p57 = scmp.eq.s32.totalorder %s17, 0
    %p58 = por %p56, %p57
    %s59 = ssub.s32 %s19, %s26
    %p60 = scmp.eq.s32.totalorder %s59, 0
    %s62 = sadd.s32 %s61, 1
    %s63 = scalar_select %p60, %s61, %s62
    %p66 = pneg %p60
    %p67 = scmp.eq.s32.totalorder %s11, 1
    %p68 = por %p66, %p67
    %p69 = scmp.ne.s32.totalorder %s61, %s64
    %p70 = scmp.eq.s32.totalorder %s11, 0
    %p71 = por %p69, %p70
    %p72 = scmp.ne.s32.totalorder %s61, %s64
    %p73 = scmp.eq.s32.totalorder %s16, 1
    %p74 = por %p72, %p73
    %p75 = scmp.ne.s32.totalorder %s64, %s65
    %p76 = scmp.eq.s32.totalorder %s16, 0
    %p77 = por %p75, %p76
    %p78 = scmp.ne.s32.totalorder %s64, %s65
    %p79 = scmp.eq.s32.totalorder %s17, 1
    %p80 = por %p78, %p79
    %p82 = scmp.ne.s32.totalorder %s65, %s81
    %p83 = scmp.eq.s32.totalorder %s17, 0
    %p84 = por %p82, %p83
    %s86 = sadd.s32 %s85, 1
    %p89 = scmp.eq.s32.totalorder %s11, 1
    %p90 = scmp.ne.s32.totalorder %s85, %s87
    %p91 = scmp.eq.s32.totalorder %s11, 0
    %p92 = por %p90, %p91
    %p93 = scmp.ne.s32.totalorder %s85, %s87
    %p94 = scmp.eq.s32.totalorder %s16, 1
    %p95 = por %p93, %p94
    %p96 = scmp.ne.s32.totalorder %s87, %s88
    %p97 = scmp.eq.s32.totalorder %s16, 0
    %p98 = por %p96, %p97
    %p99 = scmp.ne.s32.totalorder %s87, %s88
    %p100 = scmp.eq.s32.totalorder %s17, 1
    %p101 = por %p99, %p100
    %p103 = scmp.ne.s32.totalorder %s88, %s102
    %p104 = scmp.eq.s32.totalorder %s17, 0
    %p105 = por %p103, %p104
    %s107 = sadd.s32 %s106, 1
    %p110 = scmp.eq.s32.totalorder %s11, 1
    %p111 = scmp.ne.s32.totalorder %s106, %s108
    %p112 = scmp.eq.s32.totalorder %s11, 0
    %p113 = por %p111, %p112
    %p114 = scmp.ne.s32.totalorder %s106, %s108
    %p115 = scmp.eq.s32.totalorder %s16, 1
    %p116 = por %p114, %p115
    %p117 = scmp.ne.s32.totalorder %s108, %s109
    %p118 = scmp.eq.s32.totalorder %s16, 0
    %p119 = por %p117, %p118
    %p120 = scmp.ne.s32.totalorder %s108, %s109
    %p121 = scmp.eq.s32.totalorder %s17, 1
    %p122 = por %p120, %p121
    %p124 = scmp.ne.s32.totalorder %s109, %s123
    %p125 = scmp.eq.s32.totalorder %s17, 0
    %p126 = por %p124, %p125
    %s128 = sadd.s32 %s127, 1
    %p131 = scmp.eq.s32.totalorder %s11, 1
    %p132 = scmp.ne.s32.totalorder %s127, %s129
    %p133 = scmp.eq.s32.totalorder %s11, 0
    %p134 = por %p132, %p133
    %p135 = scmp.ne.s32.totalorder %s127, %s129
    %p136 = scmp.eq.s32.totalorder %s16, 1
    %p137 = por %p135, %p136
    %p138 = scmp.ne.s32.totalorder %s129, %s130
    %p139 = scmp.eq.s32.totalorder %s16, 0
    %p140 = por %p138, %p139
    %p141 = scmp.ne.s32.totalorder %s129, %s130
    %p142 = scmp.eq.s32.totalorder %s17, 1
    %p143 = por %p141, %p142
    %p145 = scmp.ne.s32.totalorder %s130, %s144
    %p146 = scmp.eq.s32.totalorder %s17, 0
    %p147 = por %p145, %p146
    %s148 = ssub.s32 %s18, %s30
    %s149 = ssub.s32 %s19, %s26
    %s150 = sor.u32 %s148, %s149
    %p151 = scmp.eq.s32.totalorder %s150, 0
    %s153 = sadd.s32 %s152, 1
    %s154 = scalar_select %p151, %s152, %s153
    %p157 = pneg %p151
    %p158 = scmp.eq.s32.totalorder %s11, 1
    %p159 = por %p157, %p158
    %p160 = scmp.ne.s32.totalorder %s152, %s155
    %p161 = scmp.eq.s32.totalorder %s11, 0
    %p162 = por %p160, %p161
    %p163 = scmp.ne.s32.totalorder %s152, %s155
    %p164 = scmp.eq.s32.totalorder %s16, 1
    %p165 = por %p163, %p164
    %p166 = scmp.ne.s32.totalorder %s155, %s156
    %p167 = scmp.eq.s32.totalorder %s16, 0
    %p168 = por %p166, %p167
    %p169 = scmp.ne.s32.totalorder %s155, %s156
    %p170 = scmp.eq.s32.totalorder %s17, 1
    %p171 = por %p169, %p170
    %p173 = scmp.ne.s32.totalorder %s156, %s172
    %p174 = scmp.eq.s32.totalorder %s17, 0
    %p175 = por %p173, %p174
    %p176 = scmp.le.s32.totalorder 1, %s11
    %p177 = scmp.lt.s32.totalorder %s11, 3
    %p178 = pnand %p176, %p177
    %p179 = pneg %p178
    // Predicated region
    $region9: #{_lambda_.12} parent=5 // pred_check
      _
    $region10: #{_lambda_.12} parent=5 // pred_check_branch
      %181 = sbr.rel (%p178) target = $region12
    $region11: #{_lambda_.12} parent=5 // pred_region
      %s182 = ssub.s32 %s11, 1
      // Predicated region
      $region13: #{_lambda_.12} parent=11 // pred_check
        %p183 = pneg %p77
      $region14: #{_lambda_.12} parent=11 // pred_check_branch
        %185 = sbr.rel (%p183) target = $region16
      $region15: #{_lambda_.12} parent=11 // pred_region
        %p186 = scmp.lt.s32.totalorder %s21, 0
        %s187 = scalar_select %p186, %s21, 0
        %s188 = smul.addr %s187, 8
        %s189 = scalar_lea.vmem %s1, %s188
      $region16: #{_lambda_.12} parent=11 // pred_fallthru
        _
      // Predicated region
      $region17: #{_lambda_.12} parent=11 // pred_check
        %p190 = pneg %p98
      $region18: #{_lambda_.12} parent=11 // pred_check_branch
        %192 = sbr.rel (%p190) target = $region20
      $region19: #{_lambda_.12} parent=11 // pred_region
        _
      $region20: #{_lambda_.12} parent=11 // pred_fallthru
        _
      // Predicated region
      $region21: #{_lambda_.12} parent=11 // pred_check
        %p193 = pneg %p119
      $region22: #{_lambda_.12} parent=11 // pred_check_branch
        %195 = sbr.rel (%p193) target = $region24
      $region23: #{_lambda_.12} parent=11 // pred_region
        _
      $region24: #{_lambda_.12} parent=11 // pred_fallthru
        _
      // Predicated region
      $region25: #{_lambda_.12} parent=11 // pred_check
        %p196 = pneg %p140
      $region26: #{_lambda_.12} parent=11 // pred_check_branch
        %198 = sbr.rel (%p196) target = $region28
      $region27: #{_lambda_.12} parent=11 // pred_region
        _
      $region28: #{_lambda_.12} parent=11 // pred_fallthru
        _
    $region12: #{_lambda_.12} parent=5 // pred_fallthru
      _
    %p199 = scmp.lt.s32.totalorder %s11, 2
    // Predicated region
    $region29: #{_lambda_.12} parent=5 // pred_check
      %p200 = pneg %p199
    $region30: #{_lambda_.12} parent=5 // pred_check_branch
      %202 = sbr.rel (%p200) target = $region32
    $region31: #{_lambda_.12} parent=5 // pred_region
      // Predicated region
      $region33: #{_lambda_.12} parent=31 // pred_check
        %p203 = pneg %p45
      $region34: #{_lambda_.12} parent=31 // pred_check_branch
        %205 = sbr.rel (%p203) target = $region36
      $region35: #{_lambda_.12} parent=31 // pred_region
        %p206 = scmp.lt.s32.totalorder %s18, 1
        %s207 = scalar_select %p206, %s18, 1
        %p208 = scmp.lt.s32.totalorder %s19, 0
        %s209 = scalar_select %p208, %s19, 0
        %s210 = sadd.s32 %s209, %s207
        %s211 = smul.addr %s210, 8
        %s212 = scalar_lea.vmem %s0, %s211
      $region36: #{_lambda_.12} parent=31 // pred_fallthru
        _
    $region32: #{_lambda_.12} parent=5 // pred_fallthru
      _
    %p213 = scmp.le.s32.totalorder 1, %s11
    %p214 = scmp.lt.s32.totalorder %s11, 3
    %p215 = pnand %p213, %p214
    %p216 = pneg %p215
    // Predicated region
    $region37: #{_lambda_.12} parent=5 // pred_check
      _
    $region38: #{_lambda_.12} parent=5 // pred_check_branch
      %218 = sbr.rel (%p215) target = $region40
    $region39: #{_lambda_.12} parent=5 // pred_region
      %s219 = ssub.s32 %s11, 1
      %p220 = scmp.lt.s32.totalorder %s20, 1
      %s221 = scalar_select %p220, %s20, 1
      %p222 = scmp.lt.s32.totalorder %s21, 0
      %s223 = scalar_select %p222, %s21, 0
      %s224 = sadd.s32 %s223, %s221
      %s225 = smul.addr %s224, 8
      %s226 = scalar_lea.vmem %s0, %s225
      %p227 = pneg %p51
      %p228 = pneg %p48
      %p229 = scmp.lt.s32.totalorder %s21, 0
      %s230 = scalar_select %p229, %s21, 0
      %s231 = smul.addr %s230, 8
      %s232 = scalar_lea.vmem %s1, %s231
      %p233 = pneg %p77
      %p234 = pneg %p74
      %p235 = pneg %p98
      %p236 = pneg %p95
      %p237 = pneg %p119
      %p238 = pneg %p116
      %p239 = pneg %p140
      %p240 = pneg %p137
      %p241 = pneg %p168
      %p242 = pneg %p165
      %p243 = scmp.lt.s32.totalorder %s20, 1
      %s244 = scalar_select %p243, %s20, 1
      %p245 = scmp.lt.s32.totalorder %s21, 0
      %s246 = scalar_select %p245, %s21, 0
      %s247 = sadd.s32 %s246, %s244
      %s248 = smul.addr %s247, 4
      %s249 = scalar_lea.vmem %s5, %s248
      %p250 = scmp.lt.s32.totalorder %s20, 1
      %s251 = scalar_select %p250, %s20, 1
      %p252 = scmp.lt.s32.totalorder %s21, 0
      %s253 = scalar_select %p252, %s21, 0
      %s254 = sadd.s32 %s253, %s251
      %s255 = smul.addr %s254, 8
      %s256 = scalar_lea.vmem %s0, %s255
      %p257 = scmp.lt.s32.totalorder %s21, 0
      %s258 = scalar_select %p257, %s21, 0
      %s259 = smul.addr %s258, 8
      %s260 = scalar_lea.vmem %s1, %s259
      %p261 = scmp.lt.s32.totalorder %s20, 1
      %s262 = scalar_select %p261, %s20, 1
      %p263 = scmp.lt.s32.totalorder %s21, 0
      %s264 = scalar_select %p263, %s21, 0
      %s265 = sadd.s32 %s264, %s262
      %s266 = smul.addr %s265, 4
      %s267 = scalar_lea.vmem %s5, %s266
      %v268 = vld [vmem:[%s256] sm:$0xff]
      %v269 = vld [vmem:[%s260] sm:$0xff]
      %v270 = vadd.f32 %v268, %v269
      %v271 = vld [vmem:[%s2] sm:$0x1]
      %v273 = vlaneseq
      %v274 = vshrl.u32 %v273, 7
      %v275 = vsub.s32 0, %v274
      %v276 = vrot.slane %v271, %v275
      %v278 = vadd.f32 %v270, %v276
      %vm279 = vcmask 261120
      %v280 = vsel %vm279, %v278, 0.0
      %281 = vadd.xlane.f32.xlu0 %v280
      %v282 = vpop.xlane.xlu0 %281
      %v283 = vrcp.pop 32.0
      %v284 = vmul.f32 %v282, %v283
      %v285 = vsub.f32 %v278, %v284
      %v286 = vmul.f32 %v285, %v285
      %v287 = vsel %vm279, %v286, 0.0
      %288 = vadd.xlane.f32.xlu0 %v287
      %v289 = vpop.xlane.xlu0 %288
      %v290 = vmul.f32 %v289, %v283
      %v291 = vadd.f32 %v290, 1e-12
      %v292 = vrsqrt.pop %v291
      %v293 = vmul.f32 %v285, %v292
      %v294 = vld [vmem:[%s3] sm:$0x1]
      %v296 = vlaneseq
      %v297 = vshrl.u32 %v296, 7
      %v298 = vsub.s32 0, %v297
      %v299 = vrot.slane %v294, %v298
      %v301 = vmul.f32 %v293, %v299
      %v302 = vld [vmem:[%s4] sm:$0x1]
      %v304 = vlaneseq
      %v305 = vshrl.u32 %v304, 7
      %v306 = vsub.s32 0, %v305
      %v307 = vrot.slane %v302, %v306
      %v309 = vadd.f32 %v301, %v307
      %v310 = vpack.c.bf16 %v309, %v309
      %vm311 = vcmask 257024
      %312 = vst.msk [vmem:[%s267] sm:$0xf] %vm311, %v310
      %p313 = scmp.lt.s32.totalorder %s20, 1
      %s314 = scalar_select %p313, %s20, 1
      %p315 = scmp.lt.s32.totalorder %s21, 0
      %s316 = scalar_select %p315, %s21, 0
      %s317 = sadd.s32 %s316, %s314
      %s318 = smul.addr %s317, 4
      %s319 = scalar_lea.vmem %s5, %s318
      // Predicated region
      $region41: #{_lambda_.12} parent=39 // pred_check
        %p320 = pneg %p165
      $region42: #{_lambda_.12} parent=39 // pred_check_branch
        %322 = sbr.rel (%p320) target = $region44
      $region43: #{_lambda_.12} parent=39 // pred_region
        _
      $region44: #{_lambda_.12} parent=39 // pred_fallthru
        _
    $region40: #{_lambda_.12} parent=5 // pred_fallthru
      _
    %p323 = scmp.le.s32.totalorder 2, %s11
    // Predicated region
    $region45: #{_lambda_.12} parent=5 // pred_check
      %p324 = pneg %p323
    $region46: #{_lambda_.12} parent=5 // pred_check_branch
      %326 = sbr.rel (%p324) target = $region48
    $region47: #{_lambda_.12} parent=5 // pred_region
      %s327 = ssub.s32 %s11, 2
      // Predicated region
      $region49: #{_lambda_.12} parent=47 // pred_check
        %p328 = pneg %p171
      $region50: #{_lambda_.12} parent=47 // pred_check_branch
        %330 = sbr.rel (%p328) target = $region52
      $region51: #{_lambda_.12} parent=47 // pred_region
        %p331 = scmp.lt.s32.totalorder %s22, 1
        %s332 = scalar_select %p331, %s22, 1
        %p333 = scmp.lt.s32.totalorder %s23, 0
        %s334 = scalar_select %p333, %s23, 0
        %s335 = sadd.s32 %s334, %s332
        %s336 = smul.addr %s335, 4
        %s337 = scalar_lea.vmem %s5, %s336
      $region52: #{_lambda_.12} parent=47 // pred_fallthru
        _
    $region48: #{_lambda_.12} parent=5 // pred_fallthru
      _
  $region6: #{_lambda_.12} parent=0 // loop_footer
    %s15 = sadd.s32 1, %s11
  $region7: #{_lambda_.12} parent=0 // loop_footer_branch
    %10 = sbr.rel target = $region3
  $region8: #{_lambda_.12} parent=0 // loop_exit
    _

// kernel: _lambda_.15
$region0: #{_lambda_.15}
  #allocation0 [shape = 'u32[]', space=smem, size = 0x4, offset = 0x4, fixed_abs, tag = 'smem constant byte address 0x4 - core index']
  #allocation1 [shape = 'u32[144,128]{1,0:T(1,128)}', space=vmem, size = 0x12000, scoped, tag = 'internal scratch']
  %s0 = inlined_call_operand.vmem [shape: bf16[16,32], index: 0, kind: input, shape index: {}]
  %s1 = inlined_call_operand.vmem [shape: bf16[32,32], index: 1, kind: input, shape index: {}]
  %s2 = inlined_call_operand.vmem [shape: f32[1,32], index: 2, kind: input, shape index: {}, may-alias: {2,5}]
  %s3 = inlined_call_operand.vmem [shape: bf16[16,32], index: 3, kind: input, shape index: {}]
  %s4 = inlined_call_operand.vmem [shape: f32[1,32], index: 4, kind: input, shape index: {}]
  %s5 = inlined_call_operand.vmem [shape: f32[1,32], index: 5, kind: input, shape index: {}, may-alias: {2,5}]
  %s6 = inlined_call_operand.vmem [shape: bf16[16,32], index: 6, kind: output, shape index: {}]
  %s7 = sld [smem:[#allocation0]]
  $region34: #{_lambda_.15} parent=0
    _
  %s9 = ssub.s32 1, %s7
  %s10 = scalar_select 0, %s9, %s7
  // Predicated region
  $region2: #{_lambda_.15} parent=0 // pred_check
    _
  $region3: #{_lambda_.15} parent=0 // pred_check_branch
    %12 = sbr.rel (0) target = $region5
  $region4: #{_lambda_.15} parent=0 // pred_region
    _
  $region5: #{_lambda_.15} parent=0 // pred_fallthru
    _
  // Predicated region
  $region6: #{_lambda_.15} parent=0 // pred_check
    _
  $region7: #{_lambda_.15} parent=0 // pred_check_branch
    %14 = sbr.rel (0) target = $region9
  $region8: #{_lambda_.15} parent=0 // pred_region
    _
  $region9: #{_lambda_.15} parent=0 // pred_fallthru
    _
  // Predicated region
  $region10: #{_lambda_.15} parent=0 // pred_check
    _
  $region11: #{_lambda_.15} parent=0 // pred_check_branch
    %16 = sbr.rel (0) target = $region13
  $region12: #{_lambda_.15} parent=0 // pred_region
    _
  $region13: #{_lambda_.15} parent=0 // pred_fallthru
    _
  // Predicated region
  $region14: #{_lambda_.15} parent=0 // pred_check
    _
  $region15: #{_lambda_.15} parent=0 // pred_check_branch
    %18 = sbr.rel (0) target = $region17
  $region16: #{_lambda_.15} parent=0 // pred_region
    _
  $region17: #{_lambda_.15} parent=0 // pred_fallthru
    _
  // Predicated region
  $region18: #{_lambda_.15} parent=0 // pred_check
    _
  $region19: #{_lambda_.15} parent=0 // pred_check_branch
    %20 = sbr.rel (0) target = $region21
  $region20: #{_lambda_.15} parent=0 // pred_region
    _
  $region21: #{_lambda_.15} parent=0 // pred_fallthru
    _
  // Predicated region
  $region22: #{_lambda_.15} parent=0 // pred_check
    _
  $region23: #{_lambda_.15} parent=0 // pred_check_branch
    %22 = sbr.rel (0) target = $region25
  $region24: #{_lambda_.15} parent=0 // pred_region
    _
  $region25: #{_lambda_.15} parent=0 // pred_fallthru
    _
  %v24 = vld [vmem:[%s0] sm:$0xf]
  %v25 = vld [vmem:[%s0 + $0x4] sm:$0xf]
  %v26 = vld [vmem:[%s1] sm:$0xf]
  %v27 = vld [vmem:[%s1 + $0x4] sm:$0xf]
  %v28 = vld [vmem:[%s1 + $0x8] sm:$0xf]
  %v29 = vld [vmem:[%s1 + $0xc] sm:$0xf]
  %v30 = vld [vmem:[%s2] sm:$0x1]
  %v32 = vlaneseq
  %v33 = vshrl.u32 %v32, 7
  %v34 = vsub.s32 0, %v33
  %v35 = vrot.slane %v30, %v34
  %v39 = vunpack.c.l.b16 %v24
  %v40 = vunpack.c.l.b16 %v25
  %v41 = vpack.c.b16 %v40, %v39
  %v46 = vunpack.c.l.b16 %v26
  %v47 = vunpack.c.l.b16 %v27
  %v48 = vunpack.c.l.b16 %v28
  %v49 = vunpack.c.l.b16 %v29
  %v50 = vpack.c.b16 %v47, %v46
  %v51 = vpack.c.b16 %v49, %v48
  %vm54 = vcmask 261120
  %v56 = vsel %vm54, %v41, 0
  %58 = vmatprep.subr.bf16.mxu0 0
  %59 = vmatpush1.bf16.msra.mxu0 %v50
  %60 = vmatprep.subr.bf16.mxu0 0
  %61 = vmatpush1.bf16.msra.mxu0 %v51
  %62 = vmatprep.subr.bf16.mxu0 0
  %63 = vmatpush1.bf16.msra.mxu0 0
  %64 = vmatprep.subr.bf16.mxu0 0
  %65 = vmatpush1.bf16.msra.mxu0 0
  %66 = vmatprep.subr.bf16.mxu0 0
  %67 = vmatpush1.bf16.msra.mxu0 0
  %68 = vmatprep.subr.bf16.mxu0 0
  %69 = vmatpush1.bf16.msra.mxu0 0
  %70 = vmatprep.subr.bf16.mxu0 0
  %71 = vmatpush1.bf16.msra.mxu0 0
  %72 = vmatprep.subr.bf16.mxu0 0
  %73 = vmatpush1.bf16.msra.mxu0 0
  %74 = vmatprep.subr.bf16.mxu0 0
  %75 = vmatpush1.bf16.msra.mxu0 0
  %76 = vmatprep.subr.bf16.mxu0 0
  %77 = vmatpush1.bf16.msra.mxu0 0
  %78 = vmatprep.subr.bf16.mxu0 0
  %79 = vmatpush1.bf16.msra.mxu0 0
  %80 = vmatprep.subr.bf16.mxu0 0
  %81 = vmatpush1.bf16.msra.mxu0 0
  %82 = vmatprep.subr.bf16.mxu0 0
  %83 = vmatpush1.bf16.msra.mxu0 0
  %84 = vmatprep.subr.bf16.mxu0 0
  %85 = vmatpush1.bf16.msra.mxu0 0
  %86 = vmatprep.subr.bf16.mxu0 0
  %87 = vmatpush1.bf16.msra.mxu0 0
  %88 = vmatprep.subr.bf16.mxu0 0
  %89 = vmatpush1.bf16.msra.mxu0 0
  %90 = vmatprep.mubr.bf16.mxu0 0
  %91 = vmatmul.mubr.bf16.gmra.mrb[0].mxu0 %v56
  %v92 = vpop.f32.mrb[0].mxu0
  %v93 = vadd.f32 %v35, %v92
  %v94 = vpop.f32.mrb[0].mxu0
  %v95 = vpop.f32.mrb[0].mxu0
  %v96 = vadd.f32 %v35, %v95
  %v97 = vpop.f32.mrb[0].mxu0
  %98 = vdwg.mxu0
  %v99 = vld [vmem:[%s3] sm:$0xf]
  %v100 = vld [vmem:[%s3 + $0x4] sm:$0xf]
  %v101 = vunpack.c.l.bf16 %v99
  %v102 = vunpack.c.l.bf16 %v100
  %v103 = vadd.f32 %v93, %v101
  %v104 = vadd.f32 %v96, %v102
  %v105 = vsel %vm54, %v103, 0.0
  %106 = vadd.xlane.f32.xlu0 %v105
  %v107 = vpop.xlane.xlu0 %106
  %v108 = vsel %vm54, %v104, 0.0
  %109 = vadd.xlane.f32.xlu0 %v108
  %v110 = vpop.xlane.xlu0 %109
  %v111 = vrcp.pop 32.0
  %v112 = vmul.f32 %v107, %v111
  %v113 = vmul.f32 %v110, %v111
  %v114 = vsub.f32 %v103, %v112
  %v115 = vsub.f32 %v104, %v113
  %v116 = vmul.f32 %v114, %v114
  %v117 = vmul.f32 %v115, %v115
  %v118 = vsel %vm54, %v116, 0.0
  %119 = vadd.xlane.f32.xlu0 %v118
  %v120 = vpop.xlane.xlu0 %119
  %v121 = vsel %vm54, %v117, 0.0
  %122 = vadd.xlane.f32.xlu0 %v121
  %v123 = vpop.xlane.xlu0 %122
  %v124 = vmul.f32 %v120, %v111
  %v125 = vmul.f32 %v123, %v111
  %v126 = vadd.f32 %v124, 1e-12
  %v127 = vadd.f32 %v125, 1e-12
  %v128 = vrsqrt.pop %v126
  %v129 = vrsqrt.pop %v127
  %v130 = vmul.f32 %v114, %v128
  %v131 = vmul.f32 %v115, %v129
  %v132 = vld [vmem:[%s4] sm:$0x1]
  %v134 = vlaneseq
  %v135 = vshrl.u32 %v134, 7
  %v136 = vsub.s32 0, %v135
  %v137 = vrot.slane %v132, %v136
  %v139 = vmul.f32 %v130, %v137
  %v140 = vmul.f32 %v131, %v137
  %v141 = vld [vmem:[%s5] sm:$0x1]
  %v143 = vlaneseq
  %v144 = vshrl.u32 %v143, 7
  %v145 = vsub.s32 0, %v144
  %v146 = vrot.slane %v141, %v145
  %v148 = vadd.f32 %v139, %v146
  %v149 = vadd.f32 %v140, %v146
  %v150 = vpack.c.bf16 %v149, %v148
  %v152 = vunpack.c.l.b16 %v150
  %v153 = vunpack.c.h.b16 %v150
  %v154 = vpack.c.b16 %v152, %v152
  %v155 = vpack.c.b16 %v153, %v153
  %vm158 = vcmask 257024
  %159 = vst.msk [vmem:[%s6] sm:$0xf] %vm158, %v154
  %160 = vst.msk [vmem:[%s6 + $0x4] sm:$0xf] %vm158, %v155
  // Predicated region
  $region26: #{_lambda_.15} parent=0 // pred_check
    _
  $region27: #{_lambda_.15} parent=0 // pred_check_branch
    %162 = sbr.rel (0) target = $region29
  $region28: #{_lambda_.15} parent=0 // pred_region
    _
  $region29: #{_lambda_.15} parent=0 // pred_fallthru
    _
  // Predicated region
  $region30: #{_lambda_.15} parent=0 // pred_check
    _
  $region31: #{_lambda_.15} parent=0 // pred_check_branch
    %164 = sbr.rel (0) target = $region33
  $region32: #{_lambda_.15} parent=0 // pred_region
    _
  $region33: #{_lambda_.15} parent=0 // pred_fallthru
    _

// kernel: _lambda_.17
$region0: #{_lambda_.17}
  #allocation0 [shape = 'u32[]', space=smem, size = 0x4, offset = 0x4, fixed_abs, tag = 'smem constant byte address 0x4 - core index']
  #allocation1 [shape = 'u32[144,128]{1,0:T(1,128)}', space=vmem, size = 0x12000, scoped, tag = 'internal scratch']
  %s0 = inlined_call_operand.vmem [shape: bf16[16,64], index: 0, kind: input, shape index: {}]
  %s1 = inlined_call_operand.vmem [shape: bf16[64,32], index: 1, kind: input, shape index: {}]
  %s2 = inlined_call_operand.vmem [shape: f32[1,32], index: 2, kind: input, shape index: {}, may-alias: {2,5}]
  %s3 = inlined_call_operand.vmem [shape: bf16[16,32], index: 3, kind: input, shape index: {}]
  %s4 = inlined_call_operand.vmem [shape: f32[1,32], index: 4, kind: input, shape index: {}]
  %s5 = inlined_call_operand.vmem [shape: f32[1,32], index: 5, kind: input, shape index: {}, may-alias: {2,5}]
  %s6 = inlined_call_operand.vmem [shape: bf16[16,32], index: 6, kind: output, shape index: {}]
  %s7 = sld [smem:[#allocation0]]
  $region34: #{_lambda_.17} parent=0
    _
  %s9 = ssub.s32 1, %s7
  %s10 = scalar_select 0, %s9, %s7
  // Predicated region
  $region2: #{_lambda_.17} parent=0 // pred_check
    _
  $region3: #{_lambda_.17} parent=0 // pred_check_branch
    %12 = sbr.rel (0) target = $region5
  $region4: #{_lambda_.17} parent=0 // pred_region
    _
  $region5: #{_lambda_.17} parent=0 // pred_fallthru
    _
  // Predicated region
  $region6: #{_lambda_.17} parent=0 // pred_check
    _
  $region7: #{_lambda_.17} parent=0 // pred_check_branch
    %14 = sbr.rel (0) target = $region9
  $region8: #{_lambda_.17} parent=0 // pred_region
    _
  $region9: #{_lambda_.17} parent=0 // pred_fallthru
    _
  // Predicated region
  $region10: #{_lambda_.17} parent=0 // pred_check
    _
  $region11: #{_lambda_.17} parent=0 // pred_check_branch
    %16 = sbr.rel (0) target = $region13
  $region12: #{_lambda_.17} parent=0 // pred_region
    _
  $region13: #{_lambda_.17} parent=0 // pred_fallthru
    _
  // Predicated region
  $region14: #{_lambda_.17} parent=0 // pred_check
    _
  $region15: #{_lambda_.17} parent=0 // pred_check_branch
    %18 = sbr.rel (0) target = $region17
  $region16: #{_lambda_.17} parent=0 // pred_region
    _
  $region17: #{_lambda_.17} parent=0 // pred_fallthru
    _
  // Predicated region
  $region18: #{_lambda_.17} parent=0 // pred_check
    _
  $region19: #{_lambda_.17} parent=0 // pred_check_branch
    %20 = sbr.rel (0) target = $region21
  $region20: #{_lambda_.17} parent=0 // pred_region
    _
  $region21: #{_lambda_.17} parent=0 // pred_fallthru
    _
  // Predicated region
  $region22: #{_lambda_.17} parent=0 // pred_check
    _
  $region23: #{_lambda_.17} parent=0 // pred_check_branch
    %22 = sbr.rel (0) target = $region25
  $region24: #{_lambda_.17} parent=0 // pred_region
    _
  $region25: #{_lambda_.17} parent=0 // pred_fallthru
    _
  %v24 = vld [vmem:[%s0] sm:$0xf]
  %v25 = vld [vmem:[%s0 + $0x4] sm:$0xf]
  %v26 = vld [vmem:[%s1] sm:$0xf]
  %v27 = vld [vmem:[%s1 + $0x4] sm:$0xf]
  %v28 = vld [vmem:[%s1 + $0x8] sm:$0xf]
  %v29 = vld [vmem:[%s1 + $0xc] sm:$0xf]
  %v30 = vld [vmem:[%s1 + $0x10] sm:$0xf]
  %v31 = vld [vmem:[%s1 + $0x14] sm:$0xf]
  %v32 = vld [vmem:[%s1 + $0x18] sm:$0xf]
  %v33 = vld [vmem:[%s1 + $0x1c] sm:$0xf]
  %v34 = vld [vmem:[%s2] sm:$0x1]
  %v36 = vlaneseq
  %v37 = vshrl.u32 %v36, 7
  %v38 = vsub.s32 0, %v37
  %v39 = vrot.slane %v34, %v38
  %v43 = vunpack.c.l.b16 %v24
  %v44 = vunpack.c.l.b16 %v25
  %v45 = vpack.c.b16 %v44, %v43
  %v54 = vunpack.c.l.b16 %v26
  %v55 = vunpack.c.l.b16 %v27
  %v56 = vunpack.c.l.b16 %v28
  %v57 = vunpack.c.l.b16 %v29
  %v58 = vunpack.c.l.b16 %v30
  %v59 = vunpack.c.l.b16 %v31
  %v60 = vunpack.c.l.b16 %v32
  %v61 = vunpack.c.l.b16 %v33
  %v62 = vpack.c.b16 %v55, %v54
  %v63 = vpack.c.b16 %v57, %v56
  %v64 = vpack.c.b16 %v59, %v58
  %v65 = vpack.c.b16 %v61, %v60
  %vm70 = vcmask 523264
  %v72 = vsel %vm70, %v45, 0
  %74 = vmatprep.subr.bf16.mxu0 0
  %75 = vmatpush1.bf16.msra.mxu0 %v62
  %76 = vmatprep.subr.bf16.mxu0 0
  %77 = vmatpush1.bf16.msra.mxu0 %v63
  %78 = vmatprep.subr.bf16.mxu0 0
  %79 = vmatpush1.bf16.msra.mxu0 %v64
  %80 = vmatprep.subr.bf16.mxu0 0
  %81 = vmatpush1.bf16.msra.mxu0 %v65
  %82 = vmatprep.subr.bf16.mxu0 0
  %83 = vmatpush1.bf16.msra.mxu0 0
  %84 = vmatprep.subr.bf16.mxu0 0
  %85 = vmatpush1.bf16.msra.mxu0 0
  %86 = vmatprep.subr.bf16.mxu0 0
  %87 = vmatpush1.bf16.msra.mxu0 0
  %88 = vmatprep.subr.bf16.mxu0 0
  %89 = vmatpush1.bf16.msra.mxu0 0
  %90 = vmatprep.subr.bf16.mxu0 0
  %91 = vmatpush1.bf16.msra.mxu0 0
  %92 = vmatprep.subr.bf16.mxu0 0
  %93 = vmatpush1.bf16.msra.mxu0 0
  %94 = vmatprep.subr.bf16.mxu0 0
  %95 = vmatpush1.bf16.msra.mxu0 0
  %96 = vmatprep.subr.bf16.mxu0 0
  %97 = vmatpush1.bf16.msra.mxu0 0
  %98 = vmatprep.subr.bf16.mxu0 0
  %99 = vmatpush1.bf16.msra.mxu0 0
  %100 = vmatprep.subr.bf16.mxu0 0
  %101 = vmatpush1.bf16.msra.mxu0 0
  %102 = vmatprep.subr.bf16.mxu0 0
  %103 = vmatpush1.bf16.msra.mxu0 0
  %104 = vmatprep.subr.bf16.mxu0 0
  %105 = vmatpush1.bf16.msra.mxu0 0
  %106 = vmatprep.mubr.bf16.mxu0 0
  %107 = vmatmul.mubr.bf16.gmra.mrb[0].mxu0 %v72
  %v108 = vpop.f32.mrb[0].mxu0
  %v109 = vadd.f32 %v39, %v108
  %v110 = vpop.f32.mrb[0].mxu0
  %v111 = vpop.f32.mrb[0].mxu0
  %v112 = vadd.f32 %v39, %v111
  %v113 = vpop.f32.mrb[0].mxu0
  %114 = vdwg.mxu0
  %v115 = vld [vmem:[%s3] sm:$0xf]
  %v116 = vld [vmem:[%s3 + $0x4] sm:$0xf]
  %v117 = vunpack.c.l.bf16 %v115
  %v118 = vunpack.c.l.bf16 %v116
  %v119 = vadd.f32 %v109, %v117
  %v120 = vadd.f32 %v112, %v118
  %vm121 = vcmask 261120
  %v122 = vsel %vm121, %v119, 0.0
  %123 = vadd.xlane.f32.xlu0 %v122
  %v124 = vpop.xlane.xlu0 %123
  %v125 = vsel %vm121, %v120, 0.0
  %126 = vadd.xlane.f32.xlu0 %v125
  %v127 = vpop.xlane.xlu0 %126
  %v128 = vrcp.pop 32.0
  %v129 = vmul.f32 %v124, %v128
  %v130 = vmul.f32 %v127, %v128
  %v131 = vsub.f32 %v119, %v129
  %v132 = vsub.f32 %v120, %v130
  %v133 = vmul.f32 %v131, %v131
  %v134 = vmul.f32 %v132, %v132
  %v135 = vsel %vm121, %v133, 0.0
  %136 = vadd.xlane.f32.xlu0 %v135
  %v137 = vpop.xlane.xlu0 %136
  %v138 = vsel %vm121, %v134, 0.0
  %139 = vadd.xlane.f32.xlu0 %v138
  %v140 = vpop.xlane.xlu0 %139
  %v141 = vmul.f32 %v137, %v128
  %v142 = vmul.f32 %v140, %v128
  %v143 = vadd.f32 %v141, 1e-12
  %v144 = vadd.f32 %v142, 1e-12
  %v145 = vrsqrt.pop %v143
  %v146 = vrsqrt.pop %v144
  %v147 = vmul.f32 %v131, %v145
  %v148 = vmul.f32 %v132, %v146
  %v149 = vld [vmem:[%s4] sm:$0x1]
  %v151 = vlaneseq
  %v152 = vshrl.u32 %v151, 7
  %v153 = vsub.s32 0, %v152
  %v154 = vrot.slane %v149, %v153
  %v156 = vmul.f32 %v147, %v154
  %v157 = vmul.f32 %v148, %v154
  %v158 = vld [vmem:[%s5] sm:$0x1]
  %v160 = vlaneseq
  %v161 = vshrl.u32 %v160, 7
  %v162 = vsub.s32 0, %v161
  %v163 = vrot.slane %v158, %v162
  %v165 = vadd.f32 %v156, %v163
  %v166 = vadd.f32 %v157, %v163
  %v167 = vpack.c.bf16 %v166, %v165
  %v169 = vunpack.c.l.b16 %v167
  %v170 = vunpack.c.h.b16 %v167
  %v171 = vpack.c.b16 %v169, %v169
  %v172 = vpack.c.b16 %v170, %v170
  %vm175 = vcmask 257024
  %176 = vst.msk [vmem:[%s6] sm:$0xf] %vm175, %v171
  %177 = vst.msk [vmem:[%s6 + $0x4] sm:$0xf] %vm175, %v172
  // Predicated region
  $region26: #{_lambda_.17} parent=0 // pred_check
    _
  $region27: #{_lambda_.17} parent=0 // pred_check_branch
    %179 = sbr.rel (0) target = $region29
  $region28: #{_lambda_.17} parent=0 // pred_region
    _
  $region29: #{_lambda_.17} parent=0 // pred_fallthru
    _
  // Predicated region
  $region30: #{_lambda_.17} parent=0 // pred_check
    _
  $region31: #{_lambda_.17} parent=0 // pred_check_branch
    %181 = sbr.rel (0) target = $region33
  $region32: #{_lambda_.17} parent=0 // pred_region
    _
  $region33: #{_lambda_.17} parent=0 // pred_fallthru
    _

// kernel: _lambda_.23
$region0: #{_lambda_.23}
  #allocation0 [shape = 'u32[]', space=smem, size = 0x4, offset = 0x4, fixed_abs, tag = 'smem constant byte address 0x4 - core index']
  #allocation1 [shape = 'u32[144,128]{1,0:T(1,128)}', space=vmem, size = 0x12000, scoped, tag = 'internal scratch']
  %s0 = inlined_call_operand.vmem [shape: bf16[2,32], index: 0, kind: input, shape index: {}]
  %s1 = inlined_call_operand.vmem [shape: bf16[32,32], index: 1, kind: input, shape index: {}]
  %s2 = inlined_call_operand.vmem [shape: f32[1,32], index: 2, kind: input, shape index: {}]
  %s3 = inlined_call_operand.vmem [shape: bf16[32,2], index: 3, kind: input, shape index: {}]
  %s4 = inlined_call_operand.vmem [shape: f32[1,2], index: 4, kind: input, shape index: {}]
  %s5 = inlined_call_operand.hbm [shape: f32[2,2], index: 5, kind: output, shape index: {}]
  %s6 = sld [smem:[#allocation0]]
  $region30: #{_lambda_.23} parent=0
    _
  %s8 = ssub.s32 1, %s6
  %s9 = scalar_select 0, %s8, %s6
  $region1: #{_lambda_.23} parent=0
    #allocation2 [shape = 'u8[1024]{0}', space=vmem, size = 0x400, scoped, tag = 'output window, operand 0, single buffered']
    #allocation3 [shape = 's32[1]{0}', space=sflag, size = 0x4, scoped, tag = 'scoped memory for _lambda_.23']
    %10 = vsyncpa [#allocation3], 0
    // Predicated region
    $region2: #{_lambda_.23} parent=1 // pred_check
      _
    $region3: #{_lambda_.23} parent=1 // pred_check_branch
      %12 = sbr.rel (0) target = $region5
    $region4: #{_lambda_.23} parent=1 // pred_region
      _
    $region5: #{_lambda_.23} parent=1 // pred_fallthru
      _
    // Predicated region
    $region6: #{_lambda_.23} parent=1 // pred_check
      _
    $region7: #{_lambda_.23} parent=1 // pred_check_branch
      %14 = sbr.rel (0) target = $region9
    $region8: #{_lambda_.23} parent=1 // pred_region
      _
    $region9: #{_lambda_.23} parent=1 // pred_fallthru
      _
    // Predicated region
    $region10: #{_lambda_.23} parent=1 // pred_check
      _
    $region11: #{_lambda_.23} parent=1 // pred_check_branch
      %16 = sbr.rel (0) target = $region13
    $region12: #{_lambda_.23} parent=1 // pred_region
      _
    $region13: #{_lambda_.23} parent=1 // pred_fallthru
      _
    // Predicated region
    $region14: #{_lambda_.23} parent=1 // pred_check
      _
    $region15: #{_lambda_.23} parent=1 // pred_check_branch
      %18 = sbr.rel (0) target = $region17
    $region16: #{_lambda_.23} parent=1 // pred_region
      _
    $region17: #{_lambda_.23} parent=1 // pred_fallthru
      _
    // Predicated region
    $region18: #{_lambda_.23} parent=1 // pred_check
      _
    $region19: #{_lambda_.23} parent=1 // pred_check_branch
      %20 = sbr.rel (0) target = $region21
    $region20: #{_lambda_.23} parent=1 // pred_region
      _
    $region21: #{_lambda_.23} parent=1 // pred_fallthru
      _
    %v22 = vld [vmem:[%s0] sm:$0x1]
    %v23 = vld [vmem:[%s1] sm:$0xf]
    %v24 = vld [vmem:[%s1 + $0x4] sm:$0xf]
    %v25 = vld [vmem:[%s1 + $0x8] sm:$0xf]
    %v26 = vld [vmem:[%s1 + $0xc] sm:$0xf]
    %v27 = vld [vmem:[%s2] sm:$0x1]
    %v29 = vlaneseq
    %v30 = vshrl.u32 %v29, 7
    %v31 = vsub.s32 0, %v30
    %v32 = vrot.slane %v27, %v31
    %v38 = vunpack.c.l.b16 %v23
    %v39 = vunpack.c.l.b16 %v24
    %v40 = vunpack.c.l.b16 %v25
    %v41 = vunpack.c.l.b16 %v26
    %v42 = vpack.c.b16 %v39, %v38
    %v43 = vpack.c.b16 %v41, %v40
    %vm46 = vcmask 261120
    %v48 = vsel %vm46, %v22, 0
    %50 = vmatprep.subr.bf16.mxu0 0
    %51 = vmatpush1.bf16.msra.mxu0 %v42
    %52 = vmatprep.subr.bf16.mxu0 0
    %53 = vmatpush1.bf16.msra.mxu0 %v43
    %54 = vmatprep.subr.bf16.mxu0 0
    %55 = vmatpush1.bf16.msra.mxu0 0
    %56 = vmatprep.subr.bf16.mxu0 0
    %57 = vmatpush1.bf16.msra.mxu0 0
    %58 = vmatprep.subr.bf16.mxu0 0
    %59 = vmatpush1.bf16.msra.mxu0 0
    %60 = vmatprep.subr.bf16.mxu0 0
    %61 = vmatpush1.bf16.msra.mxu0 0
    %62 = vmatprep.subr.bf16.mxu0 0
    %63 = vmatpush1.bf16.msra.mxu0 0
    %64 = vmatprep.subr.bf16.mxu0 0
    %65 = vmatpush1.bf16.msra.mxu0 0
    %66 = vmatprep.subr.bf16.mxu0 0
    %67 = vmatpush1.bf16.msra.mxu0 0
    %68 = vmatprep.subr.bf16.mxu0 0
    %69 = vmatpush1.bf16.msra.mxu0 0
    %70 = vmatprep.subr.bf16.mxu0 0
    %71 = vmatpush1.bf16.msra.mxu0 0
    %72 = vmatprep.subr.bf16.mxu0 0
    %73 = vmatpush1.bf16.msra.mxu0 0
    %74 = vmatprep.subr.bf16.mxu0 0
    %75 = vmatpush1.bf16.msra.mxu0 0
    %76 = vmatprep.subr.bf16.mxu0 0
    %77 = vmatpush1.bf16.msra.mxu0 0
    %78 = vmatprep.subr.bf16.mxu0 0
    %79 = vmatpush1.bf16.msra.mxu0 0
    %80 = vmatprep.subr.bf16.mxu0 0
    %81 = vmatpush1.bf16.msra.mxu0 0
    %82 = vmatprep.mubr.bf16.mxu0 0
    %83 = vmatmul.mubr.bf16.gmra.mrb[0].mxu0 %v48
    %v84 = vpop.f32.mrb[0].mxu0
    %v85 = vadd.f32 %v32, %v84
    %v86 = vpop.f32.mrb[0].mxu0
    %v87 = vpop.f32.mrb[0].mxu0
    %v88 = vpop.f32.mrb[0].mxu0
    %89 = vdwg.mxu0
    %v90 = vtanh.pop %v85
    %v91 = vld [vmem:[%s3] sm:$0xf]
    %v92 = vld [vmem:[%s3 + $0x4] sm:$0xf]
    %v93 = vld [vmem:[%s3 + $0x8] sm:$0xf]
    %v94 = vld [vmem:[%s3 + $0xc] sm:$0xf]
    %v95 = vunpack.c.l.bf16 %v91
    %v96 = vunpack.c.l.bf16 %v92
    %v97 = vunpack.c.l.bf16 %v93
    %v98 = vunpack.c.l.bf16 %v94
    %v99 = vld [vmem:[%s4] sm:$0x1]
    %v101 = vlaneseq
    %v102 = vshrl.u32 %v101, 7
    %v103 = vsub.s32 0, %v102
    %v104 = vrot.slane %v99, %v103
    %v107 = vsel %vm46, %v90, 0
    %109 = vmatprep.subr.mxu0 0.0
    %110 = vmatpush1.msra.mxu0 %v95
    %111 = vmatprep.subr.mxu0 0.0
    %112 = vmatpush1.msra.mxu0 %v96
    %113 = vmatprep.subr.mxu0 0.0
    %114 = vmatpush1.msra.mxu0 %v97
    %115 = vmatprep.subr.mxu0 0.0
    %116 = vmatpush1.msra.mxu0 %v98
    %117 = vmatprep.subr.mxu0 0.0
    %118 = vmatpush1.msra.mxu0 0.0
    %119 = vmatprep.subr.mxu0 0.0
    %120 = vmatpush1.msra.mxu0 0.0
    %121 = vmatprep.subr.mxu0 0.0
    %122 = vmatpush1.msra.mxu0 0.0
    %123 = vmatprep.subr.mxu0 0.0
    %124 = vmatpush1.msra.mxu0 0.0
    %125 = vmatprep.subr.mxu0 0.0
    %126 = vmatpush1.msra.mxu0 0.0
    %127 = vmatprep.subr.mxu0 0.0
    %128 = vmatpush1.msra.mxu0 0.0
    %129 = vmatprep.subr.mxu0 0.0
    %130 = vmatpush1.msra.mxu0 0.0
    %131 = vmatprep.subr.mxu0 0.0
    %132 = vmatpush1.msra.mxu0 0.0
    %133 = vmatprep.subr.mxu0 0.0
    %134 = vmatpush1.msra.mxu0 0.0
    %135 = vmatprep.subr.mxu0 0.0
    %136 = vmatpush1.msra.mxu0 0.0
    %137 = vmatprep.subr.mxu0 0.0
    %138 = vmatpush1.msra.mxu0 0.0
    %139 = vmatprep.subr.mxu0 0.0
    %140 = vmatpush1.msra.mxu0 0.0
    %141 = vmatprep.subr.mxu0 0.0
    %142 = vmatpush1.msra.mxu0 0.0
    %143 = vmatprep.subr.mxu0 0.0
    %144 = vmatpush1.msra.mxu0 0.0
    %145 = vmatprep.subr.mxu0 0.0
    %146 = vmatpush1.msra.mxu0 0.0
    %147 = vmatprep.subr.mxu0 0.0
    %148 = vmatpush1.msra.mxu0 0.0
    %149 = vmatprep.subr.mxu0 0.0
    %150 = vmatpush1.msra.mxu0 0.0
    %151 = vmatprep.subr.mxu0 0.0
    %152 = vmatpush1.msra.mxu0 0.0
    %153 = vmatprep.subr.mxu0 0.0
    %154 = vmatpush1.msra.mxu0 0.0
    %155 = vmatprep.subr.mxu0 0.0
    %156 = vmatpush1.msra.mxu0 0.0
    %157 = vmatprep.subr.mxu0 0.0
    %158 = vmatpush1.msra.mxu0 0.0
    %159 = vmatprep.subr.mxu0 0.0
    %160 = vmatpush1.msra.mxu0 0.0
    %161 = vmatprep.subr.mxu0 0.0
    %162 = vmatpush1.msra.mxu0 0.0
    %163 = vmatprep.subr.mxu0 0.0
    %164 = vmatpush1.msra.mxu0 0.0
    %165 = vmatprep.subr.mxu0 0.0
    %166 = vmatpush1.msra.mxu0 0.0
    %167 = vmatprep.subr.mxu0 0.0
    %168 = vmatpush1.msra.mxu0 0.0
    %169 = vmatprep.subr.mxu0 0.0
    %170 = vmatpush1.msra.mxu0 0.0
    %171 = vmatprep.subr.mxu0 0.0
    %172 = vmatpush1.msra.mxu0 0.0
    %173 = vmatprep.mubr.f32.mxu0 0.0
    %174 = vmatmul.mubr.f32.gmra.mrb[0].mxu0 %v107
    %v175 = vpop.f32.mrb[0].mxu0
    %v176 = vadd.f32 %v104, %v175
    %v177 = vpop.f32.mrb[0].mxu0
    %178 = vdwg.mxu0
    %vm179 = vcmask 9216
    %180 = vst.msk [vmem:[#allocation2] sm:$0x3] %vm179, %v176
    // Predicated region
    $region22: #{_lambda_.23} parent=1 // pred_check
      _
    $region23: #{_lambda_.23} parent=1 // pred_check_branch
      %182 = sbr.rel (0) target = $region25
    $region24: #{_lambda_.23} parent=1 // pred_region
      %s184 = ssub.s32 32, 32
      %185 = vsyncadd [#allocation3], %s184
      %s187 = sshll.u32 [#allocation2], 4
      %s188 = int_to_ptr.vmem [resolvable:$true] %s187
      %190 = dma.vmem_to_hbm [thread:$0]  %s188, 32, %s5, [#allocation3]
    $region25: #{_lambda_.23} parent=1 // pred_fallthru
      _
    // Predicated region
    $region26: #{_lambda_.23} parent=1 // pred_check
      _
    $region27: #{_lambda_.23} parent=1 // pred_check_branch
      %192 = sbr.rel (0) target = $region29
    $region28: #{_lambda_.23} parent=1 // pred_region
      %193 = dma.done [#allocation3], 32
    $region29: #{_lambda_.23} parent=1 // pred_fallthru
      _
    %194 = vsyncpa [#allocation3], 1

// kernel: _lambda_.16
$region0: #{_lambda_.16}
  #allocation0 [shape = 'u32[]', space=smem, size = 0x4, offset = 0x4, fixed_abs, tag = 'smem constant byte address 0x4 - core index']
  #allocation1 [shape = 'u32[144,128]{1,0:T(1,128)}', space=vmem, size = 0x12000, scoped, tag = 'internal scratch']
  %s0 = inlined_call_operand.vmem [shape: bf16[16,32], index: 0, kind: input, shape index: {}]
  %s1 = inlined_call_operand.vmem [shape: bf16[32,64], index: 1, kind: input, shape index: {}]
  %s2 = inlined_call_operand.vmem [shape: f32[1,64], index: 2, kind: input, shape index: {}]
  %s3 = inlined_call_operand.vmem [shape: bf16[16,64], index: 3, kind: output, shape index: {}]
  %s4 = sld [smem:[#allocation0]]
  $region22: #{_lambda_.16} parent=0
    _
  %s6 = ssub.s32 1, %s4
  %s7 = scalar_select 0, %s6, %s4
  // Predicated region
  $region2: #{_lambda_.16} parent=0 // pred_check
    _
  $region3: #{_lambda_.16} parent=0 // pred_check_branch
    %9 = sbr.rel (0) target = $region5
  $region4: #{_lambda_.16} parent=0 // pred_region
    _
  $region5: #{_lambda_.16} parent=0 // pred_fallthru
    _
  // Predicated region
  $region6: #{_lambda_.16} parent=0 // pred_check
    _
  $region7: #{_lambda_.16} parent=0 // pred_check_branch
    %11 = sbr.rel (0) target = $region9
  $region8: #{_lambda_.16} parent=0 // pred_region
    _
  $region9: #{_lambda_.16} parent=0 // pred_fallthru
    _
  // Predicated region
  $region10: #{_lambda_.16} parent=0 // pred_check
    _
  $region11: #{_lambda_.16} parent=0 // pred_check_branch
    %13 = sbr.rel (0) target = $region13
  $region12: #{_lambda_.16} parent=0 // pred_region
    _
  $region13: #{_lambda_.16} parent=0 // pred_fallthru
    _
  %v15 = vld [vmem:[%s0] sm:$0xf]
  %v16 = vld [vmem:[%s0 + $0x4] sm:$0xf]
  %v17 = vld [vmem:[%s1] sm:$0xf]
  %v18 = vld [vmem:[%s1 + $0x4] sm:$0xf]
  %v19 = vld [vmem:[%s1 + $0x8] sm:$0xf]
  %v20 = vld [vmem:[%s1 + $0xc] sm:$0xf]
  %v21 = vld [vmem:[%s2] sm:$0x1]
  %v23 = vlaneseq
  %v24 = vshrl.u32 %v23, 7
  %v25 = vsub.s32 0, %v24
  %v26 = vrot.slane %v21, %v25
  %v30 = vunpack.c.l.b16 %v15
  %v31 = vunpack.c.l.b16 %v16
  %v32 = vpack.c.b16 %v31, %v30
  %v37 = vunpack.c.l.b16 %v17
  %v38 = vunpack.c.l.b16 %v18
  %v39 = vunpack.c.l.b16 %v19
  %v40 = vunpack.c.l.b16 %v20
  %v41 = vpack.c.b16 %v38, %v37
  %v42 = vpack.c.b16 %v40, %v39
  %vm45 = vcmask 261120
  %v47 = vsel %vm45, %v32, 0
  %49 = vmatprep.subr.bf16.mxu0 0
  %50 = vmatpush1.bf16.msra.mxu0 %v41
  %51 = vmatprep.subr.bf16.mxu0 0
  %52 = vmatpush1.bf16.msra.mxu0 %v42
  %53 = vmatprep.subr.bf16.mxu0 0
  %54 = vmatpush1.bf16.msra.mxu0 0
  %55 = vmatprep.subr.bf16.mxu0 0
  %56 = vmatpush1.bf16.msra.mxu0 0
  %57 = vmatprep.subr.bf16.mxu0 0
  %58 = vmatpush1.bf16.msra.mxu0 0
  %59 = vmatprep.subr.bf16.mxu0 0
  %60 = vmatpush1.bf16.msra.mxu0 0
  %61 = vmatprep.subr.bf16.mxu0 0
  %62 = vmatpush1.bf16.msra.mxu0 0
  %63 = vmatprep.subr.bf16.mxu0 0
  %64 = vmatpush1.bf16.msra.mxu0 0
  %65 = vmatprep.subr.bf16.mxu0 0
  %66 = vmatpush1.bf16.msra.mxu0 0
  %67 = vmatprep.subr.bf16.mxu0 0
  %68 = vmatpush1.bf16.msra.mxu0 0
  %69 = vmatprep.subr.bf16.mxu0 0
  %70 = vmatpush1.bf16.msra.mxu0 0
  %71 = vmatprep.subr.bf16.mxu0 0
  %72 = vmatpush1.bf16.msra.mxu0 0
  %73 = vmatprep.subr.bf16.mxu0 0
  %74 = vmatpush1.bf16.msra.mxu0 0
  %75 = vmatprep.subr.bf16.mxu0 0
  %76 = vmatpush1.bf16.msra.mxu0 0
  %77 = vmatprep.subr.bf16.mxu0 0
  %78 = vmatpush1.bf16.msra.mxu0 0
  %79 = vmatprep.subr.bf16.mxu0 0
  %80 = vmatpush1.bf16.msra.mxu0 0
  %81 = vmatprep.mubr.bf16.mxu0 0
  %82 = vmatmul.mubr.bf16.gmra.mrb[0].mxu0 %v47
  %v83 = vpop.f32.mrb[0].mxu0
  %v84 = vadd.f32 %v26, %v83
  %v85 = vpop.f32.mrb[0].mxu0
  %v86 = vpop.f32.mrb[0].mxu0
  %v87 = vadd.f32 %v26, %v86
  %v88 = vpop.f32.mrb[0].mxu0
  %89 = vdwg.mxu0
  %v90 = vmul.f32 %v84, 0.5
  %v91 = vmul.f32 %v87, 0.5
  %v92 = vmul.f32 %v84, 0.70710677
  %v93 = vmul.f32 %v87, 0.70710677
  %v94 = verf.f32.pop %v92
  %v95 = verf.f32.pop %v93
  %v96 = vadd.f32 %v94, 1.0
  %v97 = vadd.f32 %v95, 1.0
  %v98 = vmul.f32 %v90, %v96
  %v99 = vmul.f32 %v91, %v97
  %v100 = vpack.c.bf16 %v99, %v98
  %v102 = vunpack.c.l.b16 %v100
  %v103 = vunpack.c.h.b16 %v100
  %v104 = vpack.c.b16 %v102, %v102
  %v105 = vpack.c.b16 %v103, %v103
  %vm108 = vcmask 519168
  %109 = vst.msk [vmem:[%s3] sm:$0xf] %vm108, %v104
  %110 = vst.msk [vmem:[%s3 + $0x4] sm:$0xf] %vm108, %v105
  // Predicated region
  $region14: #{_lambda_.16} parent=0 // pred_check
    _
  $region15: #{_lambda_.16} parent=0 // pred_check_branch
    %112 = sbr.rel (0) target = $region17
  $region16: #{_lambda_.16} parent=0 // pred_region
    _
  $region17: #{_lambda_.16} parent=0 // pred_fallthru
    _
  // Predicated region
  $region18: #{_lambda_.16} parent=0 // pred_check
    _
  $region19: #{_lambda_.16} parent=0 // pred_check_branch
    %114 = sbr.rel (0) target = $region21
  $region20: #{_lambda_.16} parent=0 // pred_region
    _
  $region21: #{_lambda_.16} parent=0 // pred_fallthru
    _

</llo_original>
